<compile_context>
chip_gen: v7x
topology: tpu7x:2x2x1
jax: 0.10.0
libtpu: 0.0.40
codegen_flags: <defaults>
</compile_context>

<pallas_src>
import math
import functools

import jax
import jax.numpy as jnp
from jax.experimental import pallas as pl
from jax.experimental.pallas import tpu as pltpu


def _round_up(x: int, m: int) -> int:
    return ((x + m - 1) // m) * m


def _sinpos_kernel(t_ref, f_ref, o_ref, *, half_dim: int):
    # t_ref: (TILE_B, 1) f32 timesteps; f_ref: (1, half_dim) f32 frequencies
    # o_ref: (TILE_B, 2*half_dim) f32
    args = t_ref[...] * f_ref[...]            # (TILE_B, half_dim), VPU broadcast-mul
    # Direct slice stores: no concatenate -> no intermediate tile / relayout.
    o_ref[:, :half_dim] = jnp.sin(args)
    o_ref[:, half_dim:] = jnp.cos(args)


def sinusoidal_position_embeddings(time: jax.Array, dim: int, *, tile_b: int = 512) -> jax.Array:
    """time: (B,) timesteps -> (B, dim) f32, [sin(t*f) | cos(t*f)] like the torch module."""
    assert dim % 2 == 0 and dim >= 4, "dim must be even and >= 4 (half_dim - 1 > 0)"
    half_dim = dim // 2
    B = time.shape[0]

    # Hoisted frequency table (computed once, stays resident across grid steps).
    scale = math.log(10000.0) / (half_dim - 1)
    freqs = jnp.exp(jnp.arange(half_dim, dtype=jnp.float32) * jnp.float32(-scale))
    freqs = freqs.reshape(1, half_dim)

    # Tile the batch; pad so every block is full, slice the pad off at the end.
    tile_b = min(tile_b, _round_up(B, 8))
    pB = _round_up(B, tile_b)
    t2d = jnp.pad(time.astype(jnp.float32), (0, pB - B)).reshape(pB, 1)

    kernel = functools.partial(_sinpos_kernel, half_dim=half_dim)
    out = pl.pallas_call(
        kernel,
        out_shape=jax.ShapeDtypeStruct((pB, dim), jnp.float32),
        grid=(pB // tile_b,),
        in_specs=[
            pl.BlockSpec((tile_b, 1), lambda i: (i, 0)),    # timesteps, per B-tile
            pl.BlockSpec((1, half_dim), lambda i: (0, 0)),  # freqs, resident
        ],
        out_specs=pl.BlockSpec((tile_b, dim), lambda i: (i, 0)),
        compiler_params=pltpu.CompilerParams(
            dimension_semantics=("parallel",),  # shard B-tiles across TCs (v7x)
        ),
    )(t2d, freqs)
    return out[:B]


def _reference(time: jax.Array, dim: int) -> jax.Array:
    half_dim = dim // 2
    emb = math.log(10000.0) / (half_dim - 1)
    emb = jnp.exp(jnp.arange(half_dim, dtype=jnp.float32) * -emb)
    emb = time.astype(jnp.float32)[:, None] * emb[None, :]
    return jnp.concatenate([jnp.sin(emb), jnp.cos(emb)], axis=-1)


if __name__ == "__main__":
    key = jax.random.PRNGKey(0)
    B = 128
    dim = 256  # half_dim = 128 -> each half-store is a full, unmasked 128-lane vst

    # Deterministic diffusion-style timestep indices in [0, 1000).
    time = jax.random.randint(key, (B,), 0, 1000).astype(jnp.float32)

    out = sinusoidal_position_embeddings(time, dim, tile_b=64)  # grid = (2,)
    out = jax.block_until_ready(out)

    ref = _reference(time, dim)
    assert out.shape == (B, dim)
    # Tolerance accounts for differing sin/cos approximations (kernel path vs
    # XLA reference) on arguments up to ~1e3; structural errors would be O(1).
    max_err = float(jnp.max(jnp.abs(out - ref)))
    assert max_err < 5e-3, f"mismatch vs reference: max abs err {max_err}"

    print("KERNEL_OK")
</pallas_src>

<mosaic_0001>
module attributes {stable_mosaic.version = 11 : i64} {
  func.func @_sinpos_kernel(%arg0: i32, %arg1: memref<64x1xf32, #tpu.memory_space<vmem>>, %arg2: memref<1x128xf32, #tpu.memory_space<vmem>>, %arg3: memref<64x256xf32, #tpu.memory_space<vmem>>) attributes {dimension_semantics = [#tpu.dimension_semantics<parallel>], iteration_bounds = array<i64: 2>, scalar_prefetch = 0 : i64, scratch_operands = 0 : i64, tpu.core_type = #tpu.core_type<tc>, window_params = [{transform_indices = @transform_0, window_bounds = array<i64: 64, 1>}, {pipeline_mode = #tpu.pipeline_mode<synchronous>, transform_indices = @transform_1, window_bounds = array<i64: 1, 128>}, {transform_indices = @transform_2, window_bounds = array<i64: 64, 256>}]} {
    %c0 = arith.constant 0 : index
    %c0_0 = arith.constant 0 : index
    %0 = vector.load %arg1[%c0, %c0_0] : memref<64x1xf32, #tpu.memory_space<vmem>>, vector<64x1xf32>
    %c0_1 = arith.constant 0 : index
    %c0_2 = arith.constant 0 : index
    %1 = vector.load %arg2[%c0_1, %c0_2] : memref<1x128xf32, #tpu.memory_space<vmem>>, vector<1x128xf32>
    %2 = vector.broadcast %0 : vector<64x1xf32> to vector<64x128xf32>
    %3 = vector.broadcast %1 : vector<1x128xf32> to vector<64x128xf32>
    %4 = arith.mulf %2, %3 : vector<64x128xf32>
    %5 = math.sin %4 : vector<64x128xf32>
    %c0_3 = arith.constant 0 : index
    %c0_4 = arith.constant 0 : index
    %6 = vector.load %arg3[%c0_3, %c0_4] : memref<64x256xf32, #tpu.memory_space<vmem>>, vector<64x128xf32>
    tpu.vector_store %arg3[%c0_3, %c0_4], %5 {strides = array<i32>} : memref<64x256xf32, #tpu.memory_space<vmem>>, vector<64x128xf32>,
    %7 = math.cos %4 : vector<64x128xf32>
    %c0_5 = arith.constant 0 : index
    %c128 = arith.constant 128 : index
    %8 = vector.load %arg3[%c0_5, %c128] : memref<64x256xf32, #tpu.memory_space<vmem>>, vector<64x128xf32>
    tpu.vector_store %arg3[%c0_5, %c128], %7 {strides = array<i32>} : memref<64x256xf32, #tpu.memory_space<vmem>>, vector<64x128xf32>,
    return
  }
  func.func @transform_0(%arg0: i32) -> (i32, i32) {
    %c0_i32 = arith.constant 0 : i32
    %c0_i32_0 = arith.constant 0 : i32
    return %arg0, %c0_i32 : i32, i32
  }
  func.func @transform_1(%arg0: i32) -> (i32, i32) {
    %c0_i32 = arith.constant 0 : i32
    %c0_i32_0 = arith.constant 0 : i32
    %c0_i32_1 = arith.constant 0 : i32
    return %c0_i32, %c0_i32_0 : i32, i32
  }
  func.func @transform_2(%arg0: i32) -> (i32, i32) {
    %c0_i32 = arith.constant 0 : i32
    %c0_i32_0 = arith.constant 0 : i32
    return %arg0, %c0_i32 : i32, i32
  }
}

</mosaic_0001>

<llo_original>
// kernel: tpu_custom_call.1
$region0: #{tpu_custom_call.1}
  #allocation0 [shape = 'u32[]', space=smem, size = 0x4, offset = 0x4, fixed_abs, tag = 'smem constant byte address 0x4 - core index']
  #allocation1 [shape = 'u32[144,128]{1,0:T(1,128)}', space=vmem, size = 0x12000, scoped, tag = 'internal scratch']
  %s0 = inlined_call_operand.vmem [shape: f32[128,1], index: 0, kind: input, shape index: {}]
  %s1 = inlined_call_operand.vmem [shape: f32[1,128], index: 1, kind: input, shape index: {}]
  %s2 = inlined_call_operand.hbm [shape: f32[128,256], index: 2, kind: output, shape index: {}]
  %s3 = sld [smem:[#allocation0]]
  $region41: #{tpu_custom_call.1} parent=0
    _
  %s5 = ssub.s32 1, %s3
  %s6 = scalar_select 0, %s5, %s3
  $region1: #{tpu_custom_call.1} parent=0
    #allocation2 [shape = 'u8[131072]{0}', space=vmem, size = 0x20000, scoped, tag = 'output window, operand 0']
    #allocation3 [shape = 's32[2]{0}', space=sflag, size = 0x8, scoped, tag = 'scoped memory for tpu_custom_call.1']
    %7 = vsyncpa [#allocation3], 0
    %s8 = scalar_lea.sflag [#allocation3], 1
    %9 = vsyncpa %s8, 0
    loop: start=0, step=1, limit=4
    $region2: #{tpu_custom_call.1} parent=1 // loop_pre_header
      _
    $region3: #{tpu_custom_call.1} parent=1 // loop_header
      %s11 = sphi 0, %s15
      %p12 = scmp.ge.s32.totalorder %s11, 4
      %s21 = sphi 0, %s23
      %s24 = sphi 0, %s21
      %s25 = sphi 0, %s24
      %s41 = sphi 0, %s25
      %s45 = sphi 0, %s45
      %s47 = sphi 0, %s45
      %s48 = sphi 0, %s47
      %s62 = sphi 0, %s48
      %s68 = sphi 0, %s70
      %s71 = sphi 0, %s68
      %s72 = sphi 0, %s71
      %s88 = sphi 0, %s72
    $region4: #{tpu_custom_call.1} parent=1 // loop_header_branch
      %14 = sbr.rel (%p12) target = $region8
    $region5: #{tpu_custom_call.1} parent=1 // loop_body
      %s16 = ssub.s32 %s11, 1
      %s17 = ssub.s32 %s11, 2
      %s18 = sadd.s32 %s11, 1
      %s19 = ssub.s32 %s11, %s18
      %p20 = scmp.eq.s32.totalorder %s19, 0
      %s22 = sadd.s32 %s21, 1
      %s23 = scalar_select %p20, %s21, %s22
      %p26 = pneg %p20
      %p27 = scmp.eq.s32.totalorder %s11, 1
      %p28 = por %p26, %p27
      %p29 = scmp.ne.s32.totalorder %s21, %s24
      %p30 = scmp.eq.s32.totalorder %s11, 0
      %p31 = por %p29, %p30
      %p32 = scmp.ne.s32.totalorder %s21, %s24
      %p33 = scmp.eq.s32.totalorder %s16, 1
      %p34 = por %p32, %p33
      %p35 = scmp.ne.s32.totalorder %s24, %s25
      %p36 = scmp.eq.s32.totalorder %s16, 0
      %p37 = por %p35, %p36
      %p38 = scmp.ne.s32.totalorder %s24, %s25
      %p39 = scmp.eq.s32.totalorder %s17, 1
      %p40 = por %p38, %p39
      %p42 = scmp.ne.s32.totalorder %s25, %s41
      %p43 = scmp.eq.s32.totalorder %s17, 0
      %p44 = por %p42, %p43
      %s46 = sadd.s32 %s45, 1
      %p49 = scmp.eq.s32.totalorder %s11, 1
      %p50 = scmp.ne.s32.totalorder %s45, %s47
      %p51 = scmp.eq.s32.totalorder %s11, 0
      %p52 = por %p50, %p51
      %p53 = scmp.ne.s32.totalorder %s45, %s47
      %p54 = scmp.eq.s32.totalorder %s16, 1
      %p55 = por %p53, %p54
      %p56 = scmp.ne.s32.totalorder %s47, %s48
      %p57 = scmp.eq.s32.totalorder %s16, 0
      %p58 = por %p56, %p57
      %p59 = scmp.ne.s32.totalorder %s47, %s48
      %p60 = scmp.eq.s32.totalorder %s17, 1
      %p61 = por %p59, %p60
      %p63 = scmp.ne.s32.totalorder %s48, %s62
      %p64 = scmp.eq.s32.totalorder %s17, 0
      %p65 = por %p63, %p64
      %s66 = ssub.s32 %s11, %s18
      %p67 = scmp.eq.s32.totalorder %s66, 0
      %s69 = sadd.s32 %s68, 1
      %s70 = scalar_select %p67, %s68, %s69
      %p73 = pneg %p67
      %p74 = scmp.eq.s32.totalorder %s11, 1
      %p75 = por %p73, %p74
      %p76 = scmp.ne.s32.totalorder %s68, %s71
      %p77 = scmp.eq.s32.totalorder %s11, 0
      %p78 = por %p76, %p77
      %p79 = scmp.ne.s32.totalorder %s68, %s71
      %p80 = scmp.eq.s32.totalorder %s16, 1
      %p81 = por %p79, %p80
      %p82 = scmp.ne.s32.totalorder %s71, %s72
      %p83 = scmp.eq.s32.totalorder %s16, 0
      %p84 = por %p82, %p83
      %p85 = scmp.ne.s32.totalorder %s71, %s72
      %p86 = scmp.eq.s32.totalorder %s17, 1
      %p87 = por %p85, %p86
      %p89 = scmp.ne.s32.totalorder %s72, %s88
      %p90 = scmp.eq.s32.totalorder %s17, 0
      %p91 = por %p89, %p90
      %p92 = scmp.le.s32.totalorder 1, %s11
      %p93 = scmp.lt.s32.totalorder %s11, 3
      %p94 = pnand %p92, %p93
      %p95 = pneg %p94
      // Predicated region
      $region9: #{tpu_custom_call.1} parent=5 // pred_check
        _
      $region10: #{tpu_custom_call.1} parent=5 // pred_check_branch
        %97 = sbr.rel (%p94) target = $region12
      $region11: #{tpu_custom_call.1} parent=5 // pred_region
        %s98 = ssub.s32 %s11, 1
        // Predicated region
        $region13: #{tpu_custom_call.1} parent=11 // pred_check
          %p99 = pneg %p58
        $region14: #{tpu_custom_call.1} parent=11 // pred_check_branch
          %101 = sbr.rel (%p99) target = $region16
        $region15: #{tpu_custom_call.1} parent=11 // pred_region
          _
        $region16: #{tpu_custom_call.1} parent=11 // pred_fallthru
          _
      $region12: #{tpu_custom_call.1} parent=5 // pred_fallthru
        _
      %p102 = scmp.lt.s32.totalorder %s11, 2
      // Predicated region
      $region17: #{tpu_custom_call.1} parent=5 // pred_check
        %p103 = pneg %p102
      $region18: #{tpu_custom_call.1} parent=5 // pred_check_branch
        %105 = sbr.rel (%p103) target = $region20
      $region19: #{tpu_custom_call.1} parent=5 // pred_region
        // Predicated region
        $region21: #{tpu_custom_call.1} parent=19 // pred_check
          %p106 = pneg %p31
        $region22: #{tpu_custom_call.1} parent=19 // pred_check_branch
          %108 = sbr.rel (%p106) target = $region24
        $region23: #{tpu_custom_call.1} parent=19 // pred_region
          %s109 = smul.u32 8, %s11
          %p110 = scmp.lt.s32.totalorder %s109, 15
          %s111 = scalar_select %p110, %s109, 15
          %s112 = smul.addr %s111, 8
          %s113 = scalar_lea.vmem %s0, %s112
          %s114 = smul.u32 8, %s11
        $region24: #{tpu_custom_call.1} parent=19 // pred_fallthru
          _
      $region20: #{tpu_custom_call.1} parent=5 // pred_fallthru
        _
      %p115 = scmp.le.s32.totalorder 1, %s11
      %p116 = scmp.lt.s32.totalorder %s11, 3
      %p117 = pnand %p115, %p116
      %p118 = pneg %p117
      // Predicated region
      $region25: #{tpu_custom_call.1} parent=5 // pred_check
        _
      $region26: #{tpu_custom_call.1} parent=5 // pred_check_branch
        %120 = sbr.rel (%p117) target = $region28
      $region27: #{tpu_custom_call.1} parent=5 // pred_region
        %s121 = ssub.s32 %s11, 1
        %s122 = smul.u32 8, %s16
        %p123 = scmp.lt.s32.totalorder %s122, 15
        %s124 = scalar_select %p123, %s122, 15
        %s125 = smul.addr %s124, 8
        %s126 = scalar_lea.vmem %s0, %s125
        %p127 = pneg %p37
        %p128 = pneg %p34
        %p129 = pneg %p58
        %p130 = pneg %p55
        %p131 = pneg %p84
        %p132 = pneg %p81
        %s133 = sand.u32 %s71, 1
        %s134 = scalar_lea.sflag [#allocation3], %s133
        %s135 = sand.u32 %s71, 1
        %s136 = smul.addr %s135, 128
        %s137 = scalar_lea.vmem [#allocation2], %s136
        %s138 = smul.u32 8, %s16
        %p139 = scmp.lt.s32.totalorder %s138, 15
        %s140 = scalar_select %p139, %s138, 15
        %s141 = smul.addr %s140, 8
        %s142 = scalar_lea.vmem %s0, %s141
        %s143 = smul.u32 8, %s16
        %s144 = smul.u32 8, %s16
        %v145 = vld [vmem:[%s142] sm:$0xff]
        %v146 = vld [vmem:[%s142 + $0x8] sm:$0xff]
        %v147 = vld [vmem:[%s142 + $0x10] sm:$0xff]
        %v148 = vld [vmem:[%s142 + $0x18] sm:$0xff]
        %v149 = vld [vmem:[%s142 + $0x20] sm:$0xff]
        %v150 = vld [vmem:[%s142 + $0x28] sm:$0xff]
        %v151 = vld [vmem:[%s142 + $0x30] sm:$0xff]
        %v152 = vld [vmem:[%s142 + $0x38] sm:$0xff]
        %v153 = vld [vmem:[%s1] sm:$0x1]
        %155 = vset.pattern.permute.xlu0 0
        %156 = vperm.xlu0 %155, %v145
        %v157 = vpop.permute.xlu0 %156
        %160 = vset.pattern.permute.xlu0 0
        %161 = vperm.xlu0 %160, %v146
        %v162 = vpop.permute.xlu0 %161
        %165 = vset.pattern.permute.xlu0 0
        %166 = vperm.xlu0 %165, %v147
        %v167 = vpop.permute.xlu0 %166
        %170 = vset.pattern.permute.xlu0 0
        %171 = vperm.xlu0 %170, %v148
        %v172 = vpop.permute.xlu0 %171
        %175 = vset.pattern.permute.xlu0 0
        %176 = vperm.xlu0 %175, %v149
        %v177 = vpop.permute.xlu0 %176
        %180 = vset.pattern.permute.xlu0 0
        %181 = vperm.xlu0 %180, %v150
        %v182 = vpop.permute.xlu0 %181
        %185 = vset.pattern.permute.xlu0 0
        %186 = vperm.xlu0 %185, %v151
        %v187 = vpop.permute.xlu0 %186
        %190 = vset.pattern.permute.xlu0 0
        %191 = vperm.xlu0 %190, %v152
        %v192 = vpop.permute.xlu0 %191
        %v195 = vlaneseq
        %v196 = vshrl.u32 %v195, 7
        %v197 = vsub.s32 0, %v196
        %v198 = vrot.slane %v153, %v197
        %v200 = vmul.f32 %v157, %v198
        %v201 = vmul.f32 %v162, %v198
        %v202 = vmul.f32 %v167, %v198
        %v203 = vmul.f32 %v172, %v198
        %v204 = vmul.f32 %v177, %v198
        %v205 = vmul.f32 %v182, %v198
        %v206 = vmul.f32 %v187, %v198
        %v207 = vmul.f32 %v192, %v198
        %v208 = vand.u32 2147483647, %v200
        %vm209 = vcmp.le.f32.partialorder %v208, 0.7853982
        %vm210 = vcmp.lt.s32.totalorder %v200, 0
        %v211 = vand.u32 %v200, 2139095040
        %v212 = vshrl.u32 %v211, 23
        %v213 = vsub.s32 %v212, 127
        %v214 = vand.u32 2147483647, %v200
        %v215 = vand.u32 %v214, 8388607
        %v216 = vor.u32 %v215, 8388608
        %v217 = vsub.s32 0, %v216
        %v218 = vadd.s32 %v213, 1
        %vm219 = vcmp.gt.s32.totalorder %v218, 0
        %v220 = vsel %vm219, %v218, 0
        %v221 = vshrl.u32 %v220, 5
        %v222 = vand.u32 %v220, 31
        %v223 = vsub.s32 32, %v222
        %v224 = vshrl.u32 683565275, %v223
        %v225 = vshll.u32 683565275, %v222
        %v226 = vshrl.u32 2475754826, %v223
        %v227 = vor.u32 %v225, %v226
        %v228 = vshll.u32 2475754826, %v222
        %v229 = vshrl.u32 2131351028, %v223
        %v230 = vor.u32 %v228, %v229
        %v231 = vshll.u32 2131351028, %v222
        %v232 = vshrl.u32 2102212464, %v223
        %v233 = vor.u32 %v231, %v232
        %v234 = vshll.u32 2102212464, %v222
        %v235 = vshrl.u32 920167782, %v223
        %v236 = vor.u32 %v234, %v235
        %v237 = vshll.u32 920167782, %v222
        %v238 = vshrl.u32 1326507024, %v223
        %v239 = vor.u32 %v237, %v238
        %vm240 = vcmp.lt.s32.totalorder %v221, 1
        %vm241 = vcmp.lt.s32.totalorder %v221, 2
        %vm242 = vcmp.lt.s32.totalorder %v221, 3
        %vm243 = vcmp.lt.s32.totalorder %v221, 4
        %v244 = vsel %vm240, %v224, %v227
        %v245 = vsel %vm243, %v233, 2102212464
        %v246 = vsel %vm242, %v230, %v245
        %v247 = vsel %vm241, %v244, %v246
        %v248 = vsel %vm240, %v227, %v230
        %v249 = vsel %vm243, %v236, 920167782
        %v250 = vsel %vm242, %v233, %v249
        %v251 = vsel %vm241, %v248, %v250
        %v252 = vsel %vm240, %v230, %v233
        %v253 = vsel %vm243, %v239, 1326507024
        %v254 = vsel %vm242, %v236, %v253
        %v255 = vsel %vm241, %v252, %v254
        %v256 = vshll.u32 %v216, 8
        %v257 = vmul.u32.u64.compose %v256, %v255
        %v258 = vextract.low.u32 %v257
        %v259 = vextract.high.u32 %v257
        %v260 = vmul.u32.u64.compose %v256, %v251
        %v261 = vextract.low.u32 %v260
        %v262 = vextract.high.u32 %v260
        %v263 = vmul.u32 %v256, %v247
        %v264 = vadd.s32 %v259, %v261
        %vm265 = vc.u32 %v259, %v261
        %v266 = vadd.s32 %v262, 1
        %v267 = vsel %vm265, %v266, %v262
        %v268 = vadd.s32 %v263, %v267
        %v269 = vadd.s32 %v268, 536870912
        %v270 = vshrl.u32 %v269, 30
        %v271 = vshll.u32 %v270, 30
        %v272 = vsub.s32 %v268, %v271
        %vm273 = vcmp.lt.s32.totalorder %v272, 0
        %v274 = vsub.s32 0, %v272
        %v275 = vsel %vm273, %v274, %v272
        %v276 = vclz %v275
        %v277 = vsub.s32 %v276, 2
        %vm278 = vcmp.gt.s32.totalorder 0, %v277
        %v279 = vsel %vm278, 0, %v277
        %v280 = vsub.s32 32, %v279
        %v281 = vshll.u32 %v272, %v279
        %v282 = vshrl.u32 %v264, %v280
        %v283 = vor.u32 %v281, %v282
        %v284 = vsub.s32 4294967266, %v279
        %v285 = vadd.s32 %v284, 127
        %v286 = vshll.u32 %v285, 23
        %v287 = vor.u32 4788187, %v286
        %v288 = vand.u32 2147483647, %v287
        %v290 = vcvt.s32.f32 %v283
        %v291 = vmul.f32 %v290, %v288
        %v292 = vxor.u32 %v291, 2147483648
        %v293 = vsel %vm210, %v292, %v291
        %v294 = vsub.s32 4, %v270
        %v295 = vsel %vm210, %v294, %v270
        %v296 = vsel %vm209, %v200, %v293
        %v297 = vsel %vm209, 0, %v295
        %v298 = vcosq.f32.pop %v296
        %v299 = vsinq.f32.pop %v296
        %vm300 = vweird.f32 %v200
        %v301 = vadd.s32 %v297, 3
        %v302 = vand.u32 %v301, 3
        %vm303 = vcmp.lt.s32.totalorder %v302, 2
        %vm304 = vcmp.eq.s32.totalorder %v302, 0
        %v305 = vxor.u32 %v299, 2147483648
        %v306 = vsel %vm304, %v298, %v305
        %vm307 = vcmp.eq.s32.totalorder %v302, 2
        %v308 = vxor.u32 %v298, 2147483648
        %v309 = vsel %vm307, %v308, %v299
        %v310 = vsel %vm303, %v306, %v309
        %v311 = vsel %vm300, nan, %v310
        %v312 = vand.u32 2147483647, %v201
        %vm313 = vcmp.le.f32.partialorder %v312, 0.7853982
        %vm314 = vcmp.lt.s32.totalorder %v201, 0
        %v315 = vand.u32 %v201, 2139095040
        %v316 = vshrl.u32 %v315, 23
        %v317 = vsub.s32 %v316, 127
        %v318 = vand.u32 2147483647, %v201
        %v319 = vand.u32 %v318, 8388607
        %v320 = vor.u32 %v319, 8388608
        %v321 = vsub.s32 0, %v320
        %v322 = vadd.s32 %v317, 1
        %vm323 = vcmp.gt.s32.totalorder %v322, 0
        %v324 = vsel %vm323, %v322, 0
        %v325 = vshrl.u32 %v324, 5
        %v326 = vand.u32 %v324, 31
        %v327 = vsub.s32 32, %v326
        %v328 = vshrl.u32 683565275, %v327
        %v329 = vshll.u32 683565275, %v326
        %v330 = vshrl.u32 2475754826, %v327
        %v331 = vor.u32 %v329, %v330
        %v332 = vshll.u32 2475754826, %v326
        %v333 = vshrl.u32 2131351028, %v327
        %v334 = vor.u32 %v332, %v333
        %v335 = vshll.u32 2131351028, %v326
        %v336 = vshrl.u32 2102212464, %v327
        %v337 = vor.u32 %v335, %v336
        %v338 = vshll.u32 2102212464, %v326
        %v339 = vshrl.u32 920167782, %v327
        %v340 = vor.u32 %v338, %v339
        %v341 = vshll.u32 920167782, %v326
        %v342 = vshrl.u32 1326507024, %v327
        %v343 = vor.u32 %v341, %v342
        %vm344 = vcmp.lt.s32.totalorder %v325, 1
        %vm345 = vcmp.lt.s32.totalorder %v325, 2
        %vm346 = vcmp.lt.s32.totalorder %v325, 3
        %vm347 = vcmp.lt.s32.totalorder %v325, 4
        %v348 = vsel %vm344, %v328, %v331
        %v349 = vsel %vm347, %v337, 2102212464
        %v350 = vsel %vm346, %v334, %v349
        %v351 = vsel %vm345, %v348, %v350
        %v352 = vsel %vm344, %v331, %v334
        %v353 = vsel %vm347, %v340, 920167782
        %v354 = vsel %vm346, %v337, %v353
        %v355 = vsel %vm345, %v352, %v354
        %v356 = vsel %vm344, %v334, %v337
        %v357 = vsel %vm347, %v343, 1326507024
        %v358 = vsel %vm346, %v340, %v357
        %v359 = vsel %vm345, %v356, %v358
        %v360 = vshll.u32 %v320, 8
        %v361 = vmul.u32.u64.compose %v360, %v359
        %v362 = vextract.low.u32 %v361
        %v363 = vextract.high.u32 %v361
        %v364 = vmul.u32.u64.compose %v360, %v355
        %v365 = vextract.low.u32 %v364
        %v366 = vextract.high.u32 %v364
        %v367 = vmul.u32 %v360, %v351
        %v368 = vadd.s32 %v363, %v365
        %vm369 = vc.u32 %v363, %v365
        %v370 = vadd.s32 %v366, 1
        %v371 = vsel %vm369, %v370, %v366
        %v372 = vadd.s32 %v367, %v371
        %v373 = vadd.s32 %v372, 536870912
        %v374 = vshrl.u32 %v373, 30
        %v375 = vshll.u32 %v374, 30
        %v376 = vsub.s32 %v372, %v375
        %vm377 = vcmp.lt.s32.totalorder %v376, 0
        %v378 = vsub.s32 0, %v376
        %v379 = vsel %vm377, %v378, %v376
        %v380 = vclz %v379
        %v381 = vsub.s32 %v380, 2
        %vm382 = vcmp.gt.s32.totalorder 0, %v381
        %v383 = vsel %vm382, 0, %v381
        %v384 = vsub.s32 32, %v383
        %v385 = vshll.u32 %v376, %v383
        %v386 = vshrl.u32 %v368, %v384
        %v387 = vor.u32 %v385, %v386
        %v388 = vsub.s32 4294967266, %v383
        %v389 = vadd.s32 %v388, 127
        %v390 = vshll.u32 %v389, 23
        %v391 = vor.u32 4788187, %v390
        %v392 = vand.u32 2147483647, %v391
        %v394 = vcvt.s32.f32 %v387
        %v395 = vmul.f32 %v394, %v392
        %v396 = vxor.u32 %v395, 2147483648
        %v397 = vsel %vm314, %v396, %v395
        %v398 = vsub.s32 4, %v374
        %v399 = vsel %vm314, %v398, %v374
        %v400 = vsel %vm313, %v201, %v397
        %v401 = vsel %vm313, 0, %v399
        %v402 = vcosq.f32.pop %v400
        %v403 = vsinq.f32.pop %v400
        %vm404 = vweird.f32 %v201
        %v405 = vadd.s32 %v401, 3
        %v406 = vand.u32 %v405, 3
        %vm407 = vcmp.lt.s32.totalorder %v406, 2
        %vm408 = vcmp.eq.s32.totalorder %v406, 0
        %v409 = vxor.u32 %v403, 2147483648
        %v410 = vsel %vm408, %v402, %v409
        %vm411 = vcmp.eq.s32.totalorder %v406, 2
        %v412 = vxor.u32 %v402, 2147483648
        %v413 = vsel %vm411, %v412, %v403
        %v414 = vsel %vm407, %v410, %v413
        %v415 = vsel %vm404, nan, %v414
        %v416 = vand.u32 2147483647, %v202
        %vm417 = vcmp.le.f32.partialorder %v416, 0.7853982
        %vm418 = vcmp.lt.s32.totalorder %v202, 0
        %v419 = vand.u32 %v202, 2139095040
        %v420 = vshrl.u32 %v419, 23
        %v421 = vsub.s32 %v420, 127
        %v422 = vand.u32 2147483647, %v202
        %v423 = vand.u32 %v422, 8388607
        %v424 = vor.u32 %v423, 8388608
        %v425 = vsub.s32 0, %v424
        %v426 = vadd.s32 %v421, 1
        %vm427 = vcmp.gt.s32.totalorder %v426, 0
        %v428 = vsel %vm427, %v426, 0
        %v429 = vshrl.u32 %v428, 5
        %v430 = vand.u32 %v428, 31
        %v431 = vsub.s32 32, %v430
        %v432 = vshrl.u32 683565275, %v431
        %v433 = vshll.u32 683565275, %v430
        %v434 = vshrl.u32 2475754826, %v431
        %v435 = vor.u32 %v433, %v434
        %v436 = vshll.u32 2475754826, %v430
        %v437 = vshrl.u32 2131351028, %v431
        %v438 = vor.u32 %v436, %v437
        %v439 = vshll.u32 2131351028, %v430
        %v440 = vshrl.u32 2102212464, %v431
        %v441 = vor.u32 %v439, %v440
        %v442 = vshll.u32 2102212464, %v430
        %v443 = vshrl.u32 920167782, %v431
        %v444 = vor.u32 %v442, %v443
        %v445 = vshll.u32 920167782, %v430
        %v446 = vshrl.u32 1326507024, %v431
        %v447 = vor.u32 %v445, %v446
        %vm448 = vcmp.lt.s32.totalorder %v429, 1
        %vm449 = vcmp.lt.s32.totalorder %v429, 2
        %vm450 = vcmp.lt.s32.totalorder %v429, 3
        %vm451 = vcmp.lt.s32.totalorder %v429, 4
        %v452 = vsel %vm448, %v432, %v435
        %v453 = vsel %vm451, %v441, 2102212464
        %v454 = vsel %vm450, %v438, %v453
        %v455 = vsel %vm449, %v452, %v454
        %v456 = vsel %vm448, %v435, %v438
        %v457 = vsel %vm451, %v444, 920167782
        %v458 = vsel %vm450, %v441, %v457
        %v459 = vsel %vm449, %v456, %v458
        %v460 = vsel %vm448, %v438, %v441
        %v461 = vsel %vm451, %v447, 1326507024
        %v462 = vsel %vm450, %v444, %v461
        %v463 = vsel %vm449, %v460, %v462
        %v464 = vshll.u32 %v424, 8
        %v465 = vmul.u32.u64.compose %v464, %v463
        %v466 = vextract.low.u32 %v465
        %v467 = vextract.high.u32 %v465
        %v468 = vmul.u32.u64.compose %v464, %v459
        %v469 = vextract.low.u32 %v468
        %v470 = vextract.high.u32 %v468
        %v471 = vmul.u32 %v464, %v455
        %v472 = vadd.s32 %v467, %v469
        %vm473 = vc.u32 %v467, %v469
        %v474 = vadd.s32 %v470, 1
        %v475 = vsel %vm473, %v474, %v470
        %v476 = vadd.s32 %v471, %v475
        %v477 = vadd.s32 %v476, 536870912
        %v478 = vshrl.u32 %v477, 30
        %v479 = vshll.u32 %v478, 30
        %v480 = vsub.s32 %v476, %v479
        %vm481 = vcmp.lt.s32.totalorder %v480, 0
        %v482 = vsub.s32 0, %v480
        %v483 = vsel %vm481, %v482, %v480
        %v484 = vclz %v483
        %v485 = vsub.s32 %v484, 2
        %vm486 = vcmp.gt.s32.totalorder 0, %v485
        %v487 = vsel %vm486, 0, %v485
        %v488 = vsub.s32 32, %v487
        %v489 = vshll.u32 %v480, %v487
        %v490 = vshrl.u32 %v472, %v488
        %v491 = vor.u32 %v489, %v490
        %v492 = vsub.s32 4294967266, %v487
        %v493 = vadd.s32 %v492, 127
        %v494 = vshll.u32 %v493, 23
        %v495 = vor.u32 4788187, %v494
        %v496 = vand.u32 2147483647, %v495
        %v498 = vcvt.s32.f32 %v491
        %v499 = vmul.f32 %v498, %v496
        %v500 = vxor.u32 %v499, 2147483648
        %v501 = vsel %vm418, %v500, %v499
        %v502 = vsub.s32 4, %v478
        %v503 = vsel %vm418, %v502, %v478
        %v504 = vsel %vm417, %v202, %v501
        %v505 = vsel %vm417, 0, %v503
        %v506 = vcosq.f32.pop %v504
        %v507 = vsinq.f32.pop %v504
        %vm508 = vweird.f32 %v202
        %v509 = vadd.s32 %v505, 3
        %v510 = vand.u32 %v509, 3
        %vm511 = vcmp.lt.s32.totalorder %v510, 2
        %vm512 = vcmp.eq.s32.totalorder %v510, 0
        %v513 = vxor.u32 %v507, 2147483648
        %v514 = vsel %vm512, %v506, %v513
        %vm515 = vcmp.eq.s32.totalorder %v510, 2
        %v516 = vxor.u32 %v506, 2147483648
        %v517 = vsel %vm515, %v516, %v507
        %v518 = vsel %vm511, %v514, %v517
        %v519 = vsel %vm508, nan, %v518
        %v520 = vand.u32 2147483647, %v203
        %vm521 = vcmp.le.f32.partialorder %v520, 0.7853982
        %vm522 = vcmp.lt.s32.totalorder %v203, 0
        %v523 = vand.u32 %v203, 2139095040
        %v524 = vshrl.u32 %v523, 23
        %v525 = vsub.s32 %v524, 127
        %v526 = vand.u32 2147483647, %v203
        %v527 = vand.u32 %v526, 8388607
        %v528 = vor.u32 %v527, 8388608
        %v529 = vsub.s32 0, %v528
        %v530 = vadd.s32 %v525, 1
        %vm531 = vcmp.gt.s32.totalorder %v530, 0
        %v532 = vsel %vm531, %v530, 0
        %v533 = vshrl.u32 %v532, 5
        %v534 = vand.u32 %v532, 31
        %v535 = vsub.s32 32, %v534
        %v536 = vshrl.u32 683565275, %v535
        %v537 = vshll.u32 683565275, %v534
        %v538 = vshrl.u32 2475754826, %v535
        %v539 = vor.u32 %v537, %v538
        %v540 = vshll.u32 2475754826, %v534
        %v541 = vshrl.u32 2131351028, %v535
        %v542 = vor.u32 %v540, %v541
        %v543 = vshll.u32 2131351028, %v534
        %v544 = vshrl.u32 2102212464, %v535
        %v545 = vor.u32 %v543, %v544
        %v546 = vshll.u32 2102212464, %v534
        %v547 = vshrl.u32 920167782, %v535
        %v548 = vor.u32 %v546, %v547
        %v549 = vshll.u32 920167782, %v534
        %v550 = vshrl.u32 1326507024, %v535
        %v551 = vor.u32 %v549, %v550
        %vm552 = vcmp.lt.s32.totalorder %v533, 1
        %vm553 = vcmp.lt.s32.totalorder %v533, 2
        %vm554 = vcmp.lt.s32.totalorder %v533, 3
        %vm555 = vcmp.lt.s32.totalorder %v533, 4
        %v556 = vsel %vm552, %v536, %v539
        %v557 = vsel %vm555, %v545, 2102212464
        %v558 = vsel %vm554, %v542, %v557
        %v559 = vsel %vm553, %v556, %v558
        %v560 = vsel %vm552, %v539, %v542
        %v561 = vsel %vm555, %v548, 920167782
        %v562 = vsel %vm554, %v545, %v561
        %v563 = vsel %vm553, %v560, %v562
        %v564 = vsel %vm552, %v542, %v545
        %v565 = vsel %vm555, %v551, 1326507024
        %v566 = vsel %vm554, %v548, %v565
        %v567 = vsel %vm553, %v564, %v566
        %v568 = vshll.u32 %v528, 8
        %v569 = vmul.u32.u64.compose %v568, %v567
        %v570 = vextract.low.u32 %v569
        %v571 = vextract.high.u32 %v569
        %v572 = vmul.u32.u64.compose %v568, %v563
        %v573 = vextract.low.u32 %v572
        %v574 = vextract.high.u32 %v572
        %v575 = vmul.u32 %v568, %v559
        %v576 = vadd.s32 %v571, %v573
        %vm577 = vc.u32 %v571, %v573
        %v578 = vadd.s32 %v574, 1
        %v579 = vsel %vm577, %v578, %v574
        %v580 = vadd.s32 %v575, %v579
        %v581 = vadd.s32 %v580, 536870912
        %v582 = vshrl.u32 %v581, 30
        %v583 = vshll.u32 %v582, 30
        %v584 = vsub.s32 %v580, %v583
        %vm585 = vcmp.lt.s32.totalorder %v584, 0
        %v586 = vsub.s32 0, %v584
        %v587 = vsel %vm585, %v586, %v584
        %v588 = vclz %v587
        %v589 = vsub.s32 %v588, 2
        %vm590 = vcmp.gt.s32.totalorder 0, %v589
        %v591 = vsel %vm590, 0, %v589
        %v592 = vsub.s32 32, %v591
        %v593 = vshll.u32 %v584, %v591
        %v594 = vshrl.u32 %v576, %v592
        %v595 = vor.u32 %v593, %v594
        %v596 = vsub.s32 4294967266, %v591
        %v597 = vadd.s32 %v596, 127
        %v598 = vshll.u32 %v597, 23
        %v599 = vor.u32 4788187, %v598
        %v600 = vand.u32 2147483647, %v599
        %v602 = vcvt.s32.f32 %v595
        %v603 = vmul.f32 %v602, %v600
        %v604 = vxor.u32 %v603, 2147483648
        %v605 = vsel %vm522, %v604, %v603
        %v606 = vsub.s32 4, %v582
        %v607 = vsel %vm522, %v606, %v582
        %v608 = vsel %vm521, %v203, %v605
        %v609 = vsel %vm521, 0, %v607
        %v610 = vcosq.f32.pop %v608
        %v611 = vsinq.f32.pop %v608
        %vm612 = vweird.f32 %v203
        %v613 = vadd.s32 %v609, 3
        %v614 = vand.u32 %v613, 3
        %vm615 = vcmp.lt.s32.totalorder %v614, 2
        %vm616 = vcmp.eq.s32.totalorder %v614, 0
        %v617 = vxor.u32 %v611, 2147483648
        %v618 = vsel %vm616, %v610, %v617
        %vm619 = vcmp.eq.s32.totalorder %v614, 2
        %v620 = vxor.u32 %v610, 2147483648
        %v621 = vsel %vm619, %v620, %v611
        %v622 = vsel %vm615, %v618, %v621
        %v623 = vsel %vm612, nan, %v622
        %v624 = vand.u32 2147483647, %v204
        %vm625 = vcmp.le.f32.partialorder %v624, 0.7853982
        %vm626 = vcmp.lt.s32.totalorder %v204, 0
        %v627 = vand.u32 %v204, 2139095040
        %v628 = vshrl.u32 %v627, 23
        %v629 = vsub.s32 %v628, 127
        %v630 = vand.u32 2147483647, %v204
        %v631 = vand.u32 %v630, 8388607
        %v632 = vor.u32 %v631, 8388608
        %v633 = vsub.s32 0, %v632
        %v634 = vadd.s32 %v629, 1
        %vm635 = vcmp.gt.s32.totalorder %v634, 0
        %v636 = vsel %vm635, %v634, 0
        %v637 = vshrl.u32 %v636, 5
        %v638 = vand.u32 %v636, 31
        %v639 = vsub.s32 32, %v638
        %v640 = vshrl.u32 683565275, %v639
        %v641 = vshll.u32 683565275, %v638
        %v642 = vshrl.u32 2475754826, %v639
        %v643 = vor.u32 %v641, %v642
        %v644 = vshll.u32 2475754826, %v638
        %v645 = vshrl.u32 2131351028, %v639
        %v646 = vor.u32 %v644, %v645
        %v647 = vshll.u32 2131351028, %v638
        %v648 = vshrl.u32 2102212464, %v639
        %v649 = vor.u32 %v647, %v648
        %v650 = vshll.u32 2102212464, %v638
        %v651 = vshrl.u32 920167782, %v639
        %v652 = vor.u32 %v650, %v651
        %v653 = vshll.u32 920167782, %v638
        %v654 = vshrl.u32 1326507024, %v639
        %v655 = vor.u32 %v653, %v654
        %vm656 = vcmp.lt.s32.totalorder %v637, 1
        %vm657 = vcmp.lt.s32.totalorder %v637, 2
        %vm658 = vcmp.lt.s32.totalorder %v637, 3
        %vm659 = vcmp.lt.s32.totalorder %v637, 4
        %v660 = vsel %vm656, %v640, %v643
        %v661 = vsel %vm659, %v649, 2102212464
        %v662 = vsel %vm658, %v646, %v661
        %v663 = vsel %vm657, %v660, %v662
        %v664 = vsel %vm656, %v643, %v646
        %v665 = vsel %vm659, %v652, 920167782
        %v666 = vsel %vm658, %v649, %v665
        %v667 = vsel %vm657, %v664, %v666
        %v668 = vsel %vm656, %v646, %v649
        %v669 = vsel %vm659, %v655, 1326507024
        %v670 = vsel %vm658, %v652, %v669
        %v671 = vsel %vm657, %v668, %v670
        %v672 = vshll.u32 %v632, 8
        %v673 = vmul.u32.u64.compose %v672, %v671
        %v674 = vextract.low.u32 %v673
        %v675 = vextract.high.u32 %v673
        %v676 = vmul.u32.u64.compose %v672, %v667
        %v677 = vextract.low.u32 %v676
        %v678 = vextract.high.u32 %v676
        %v679 = vmul.u32 %v672, %v663
        %v680 = vadd.s32 %v675, %v677
        %vm681 = vc.u32 %v675, %v677
        %v682 = vadd.s32 %v678, 1
        %v683 = vsel %vm681, %v682, %v678
        %v684 = vadd.s32 %v679, %v683
        %v685 = vadd.s32 %v684, 536870912
        %v686 = vshrl.u32 %v685, 30
        %v687 = vshll.u32 %v686, 30
        %v688 = vsub.s32 %v684, %v687
        %vm689 = vcmp.lt.s32.totalorder %v688, 0
        %v690 = vsub.s32 0, %v688
        %v691 = vsel %vm689, %v690, %v688
        %v692 = vclz %v691
        %v693 = vsub.s32 %v692, 2
        %vm694 = vcmp.gt.s32.totalorder 0, %v693
        %v695 = vsel %vm694, 0, %v693
        %v696 = vsub.s32 32, %v695
        %v697 = vshll.u32 %v688, %v695
        %v698 = vshrl.u32 %v680, %v696
        %v699 = vor.u32 %v697, %v698
        %v700 = vsub.s32 4294967266, %v695
        %v701 = vadd.s32 %v700, 127
        %v702 = vshll.u32 %v701, 23
        %v703 = vor.u32 4788187, %v702
        %v704 = vand.u32 2147483647, %v703
        %v706 = vcvt.s32.f32 %v699
        %v707 = vmul.f32 %v706, %v704
        %v708 = vxor.u32 %v707, 2147483648
        %v709 = vsel %vm626, %v708, %v707
        %v710 = vsub.s32 4, %v686
        %v711 = vsel %vm626, %v710, %v686
        %v712 = vsel %vm625, %v204, %v709
        %v713 = vsel %vm625, 0, %v711
        %v714 = vcosq.f32.pop %v712
        %v715 = vsinq.f32.pop %v712
        %vm716 = vweird.f32 %v204
        %v717 = vadd.s32 %v713, 3
        %v718 = vand.u32 %v717, 3
        %vm719 = vcmp.lt.s32.totalorder %v718, 2
        %vm720 = vcmp.eq.s32.totalorder %v718, 0
        %v721 = vxor.u32 %v715, 2147483648
        %v722 = vsel %vm720, %v714, %v721
        %vm723 = vcmp.eq.s32.totalorder %v718, 2
        %v724 = vxor.u32 %v714, 2147483648
        %v725 = vsel %vm723, %v724, %v715
        %v726 = vsel %vm719, %v722, %v725
        %v727 = vsel %vm716, nan, %v726
        %v728 = vand.u32 2147483647, %v205
        %vm729 = vcmp.le.f32.partialorder %v728, 0.7853982
        %vm730 = vcmp.lt.s32.totalorder %v205, 0
        %v731 = vand.u32 %v205, 2139095040
        %v732 = vshrl.u32 %v731, 23
        %v733 = vsub.s32 %v732, 127
        %v734 = vand.u32 2147483647, %v205
        %v735 = vand.u32 %v734, 8388607
        %v736 = vor.u32 %v735, 8388608
        %v737 = vsub.s32 0, %v736
        %v738 = vadd.s32 %v733, 1
        %vm739 = vcmp.gt.s32.totalorder %v738, 0
        %v740 = vsel %vm739, %v738, 0
        %v741 = vshrl.u32 %v740, 5
        %v742 = vand.u32 %v740, 31
        %v743 = vsub.s32 32, %v742
        %v744 = vshrl.u32 683565275, %v743
        %v745 = vshll.u32 683565275, %v742
        %v746 = vshrl.u32 2475754826, %v743
        %v747 = vor.u32 %v745, %v746
        %v748 = vshll.u32 2475754826, %v742
        %v749 = vshrl.u32 2131351028, %v743
        %v750 = vor.u32 %v748, %v749
        %v751 = vshll.u32 2131351028, %v742
        %v752 = vshrl.u32 2102212464, %v743
        %v753 = vor.u32 %v751, %v752
        %v754 = vshll.u32 2102212464, %v742
        %v755 = vshrl.u32 920167782, %v743
        %v756 = vor.u32 %v754, %v755
        %v757 = vshll.u32 920167782, %v742
        %v758 = vshrl.u32 1326507024, %v743
        %v759 = vor.u32 %v757, %v758
        %vm760 = vcmp.lt.s32.totalorder %v741, 1
        %vm761 = vcmp.lt.s32.totalorder %v741, 2
        %vm762 = vcmp.lt.s32.totalorder %v741, 3
        %vm763 = vcmp.lt.s32.totalorder %v741, 4
        %v764 = vsel %vm760, %v744, %v747
        %v765 = vsel %vm763, %v753, 2102212464
        %v766 = vsel %vm762, %v750, %v765
        %v767 = vsel %vm761, %v764, %v766
        %v768 = vsel %vm760, %v747, %v750
        %v769 = vsel %vm763, %v756, 920167782
        %v770 = vsel %vm762, %v753, %v769
        %v771 = vsel %vm761, %v768, %v770
        %v772 = vsel %vm760, %v750, %v753
        %v773 = vsel %vm763, %v759, 1326507024
        %v774 = vsel %vm762, %v756, %v773
        %v775 = vsel %vm761, %v772, %v774
        %v776 = vshll.u32 %v736, 8
        %v777 = vmul.u32.u64.compose %v776, %v775
        %v778 = vextract.low.u32 %v777
        %v779 = vextract.high.u32 %v777
        %v780 = vmul.u32.u64.compose %v776, %v771
        %v781 = vextract.low.u32 %v780
        %v782 = vextract.high.u32 %v780
        %v783 = vmul.u32 %v776, %v767
        %v784 = vadd.s32 %v779, %v781
        %vm785 = vc.u32 %v779, %v781
        %v786 = vadd.s32 %v782, 1
        %v787 = vsel %vm785, %v786, %v782
        %v788 = vadd.s32 %v783, %v787
        %v789 = vadd.s32 %v788, 536870912
        %v790 = vshrl.u32 %v789, 30
        %v791 = vshll.u32 %v790, 30
        %v792 = vsub.s32 %v788, %v791
        %vm793 = vcmp.lt.s32.totalorder %v792, 0
        %v794 = vsub.s32 0, %v792
        %v795 = vsel %vm793, %v794, %v792
        %v796 = vclz %v795
        %v797 = vsub.s32 %v796, 2
        %vm798 = vcmp.gt.s32.totalorder 0, %v797
        %v799 = vsel %vm798, 0, %v797
        %v800 = vsub.s32 32, %v799
        %v801 = vshll.u32 %v792, %v799
        %v802 = vshrl.u32 %v784, %v800
        %v803 = vor.u32 %v801, %v802
        %v804 = vsub.s32 4294967266, %v799
        %v805 = vadd.s32 %v804, 127
        %v806 = vshll.u32 %v805, 23
        %v807 = vor.u32 4788187, %v806
        %v808 = vand.u32 2147483647, %v807
        %v810 = vcvt.s32.f32 %v803
        %v811 = vmul.f32 %v810, %v808
        %v812 = vxor.u32 %v811, 2147483648
        %v813 = vsel %vm730, %v812, %v811
        %v814 = vsub.s32 4, %v790
        %v815 = vsel %vm730, %v814, %v790
        %v816 = vsel %vm729, %v205, %v813
        %v817 = vsel %vm729, 0, %v815
        %v818 = vcosq.f32.pop %v816
        %v819 = vsinq.f32.pop %v816
        %vm820 = vweird.f32 %v205
        %v821 = vadd.s32 %v817, 3
        %v822 = vand.u32 %v821, 3
        %vm823 = vcmp.lt.s32.totalorder %v822, 2
        %vm824 = vcmp.eq.s32.totalorder %v822, 0
        %v825 = vxor.u32 %v819, 2147483648
        %v826 = vsel %vm824, %v818, %v825
        %vm827 = vcmp.eq.s32.totalorder %v822, 2
        %v828 = vxor.u32 %v818, 2147483648
        %v829 = vsel %vm827, %v828, %v819
        %v830 = vsel %vm823, %v826, %v829
        %v831 = vsel %vm820, nan, %v830
        %v832 = vand.u32 2147483647, %v206
        %vm833 = vcmp.le.f32.partialorder %v832, 0.7853982
        %vm834 = vcmp.lt.s32.totalorder %v206, 0
        %v835 = vand.u32 %v206, 2139095040
        %v836 = vshrl.u32 %v835, 23
        %v837 = vsub.s32 %v836, 127
        %v838 = vand.u32 2147483647, %v206
        %v839 = vand.u32 %v838, 8388607
        %v840 = vor.u32 %v839, 8388608
        %v841 = vsub.s32 0, %v840
        %v842 = vadd.s32 %v837, 1
        %vm843 = vcmp.gt.s32.totalorder %v842, 0
        %v844 = vsel %vm843, %v842, 0
        %v845 = vshrl.u32 %v844, 5
        %v846 = vand.u32 %v844, 31
        %v847 = vsub.s32 32, %v846
        %v848 = vshrl.u32 683565275, %v847
        %v849 = vshll.u32 683565275, %v846
        %v850 = vshrl.u32 2475754826, %v847
        %v851 = vor.u32 %v849, %v850
        %v852 = vshll.u32 2475754826, %v846
        %v853 = vshrl.u32 2131351028, %v847
        %v854 = vor.u32 %v852, %v853
        %v855 = vshll.u32 2131351028, %v846
        %v856 = vshrl.u32 2102212464, %v847
        %v857 = vor.u32 %v855, %v856
        %v858 = vshll.u32 2102212464, %v846
        %v859 = vshrl.u32 920167782, %v847
        %v860 = vor.u32 %v858, %v859
        %v861 = vshll.u32 920167782, %v846
        %v862 = vshrl.u32 1326507024, %v847
        %v863 = vor.u32 %v861, %v862
        %vm864 = vcmp.lt.s32.totalorder %v845, 1
        %vm865 = vcmp.lt.s32.totalorder %v845, 2
        %vm866 = vcmp.lt.s32.totalorder %v845, 3
        %vm867 = vcmp.lt.s32.totalorder %v845, 4
        %v868 = vsel %vm864, %v848, %v851
        %v869 = vsel %vm867, %v857, 2102212464
        %v870 = vsel %vm866, %v854, %v869
        %v871 = vsel %vm865, %v868, %v870
        %v872 = vsel %vm864, %v851, %v854
        %v873 = vsel %vm867, %v860, 920167782
        %v874 = vsel %vm866, %v857, %v873
        %v875 = vsel %vm865, %v872, %v874
        %v876 = vsel %vm864, %v854, %v857
        %v877 = vsel %vm867, %v863, 1326507024
        %v878 = vsel %vm866, %v860, %v877
        %v879 = vsel %vm865, %v876, %v878
        %v880 = vshll.u32 %v840, 8
        %v881 = vmul.u32.u64.compose %v880, %v879
        %v882 = vextract.low.u32 %v881
        %v883 = vextract.high.u32 %v881
        %v884 = vmul.u32.u64.compose %v880, %v875
        %v885 = vextract.low.u32 %v884
        %v886 = vextract.high.u32 %v884
        %v887 = vmul.u32 %v880, %v871
        %v888 = vadd.s32 %v883, %v885
        %vm889 = vc.u32 %v883, %v885
        %v890 = vadd.s32 %v886, 1
        %v891 = vsel %vm889, %v890, %v886
        %v892 = vadd.s32 %v887, %v891
        %v893 = vadd.s32 %v892, 536870912
        %v894 = vshrl.u32 %v893, 30
        %v895 = vshll.u32 %v894, 30
        %v896 = vsub.s32 %v892, %v895
        %vm897 = vcmp.lt.s32.totalorder %v896, 0
        %v898 = vsub.s32 0, %v896
        %v899 = vsel %vm897, %v898, %v896
        %v900 = vclz %v899
        %v901 = vsub.s32 %v900, 2
        %vm902 = vcmp.gt.s32.totalorder 0, %v901
        %v903 = vsel %vm902, 0, %v901
        %v904 = vsub.s32 32, %v903
        %v905 = vshll.u32 %v896, %v903
        %v906 = vshrl.u32 %v888, %v904
        %v907 = vor.u32 %v905, %v906
        %v908 = vsub.s32 4294967266, %v903
        %v909 = vadd.s32 %v908, 127
        %v910 = vshll.u32 %v909, 23
        %v911 = vor.u32 4788187, %v910
        %v912 = vand.u32 2147483647, %v911
        %v914 = vcvt.s32.f32 %v907
        %v915 = vmul.f32 %v914, %v912
        %v916 = vxor.u32 %v915, 2147483648
        %v917 = vsel %vm834, %v916, %v915
        %v918 = vsub.s32 4, %v894
        %v919 = vsel %vm834, %v918, %v894
        %v920 = vsel %vm833, %v206, %v917
        %v921 = vsel %vm833, 0, %v919
        %v922 = vcosq.f32.pop %v920
        %v923 = vsinq.f32.pop %v920
        %vm924 = vweird.f32 %v206
        %v925 = vadd.s32 %v921, 3
        %v926 = vand.u32 %v925, 3
        %vm927 = vcmp.lt.s32.totalorder %v926, 2
        %vm928 = vcmp.eq.s32.totalorder %v926, 0
        %v929 = vxor.u32 %v923, 2147483648
        %v930 = vsel %vm928, %v922, %v929
        %vm931 = vcmp.eq.s32.totalorder %v926, 2
        %v932 = vxor.u32 %v922, 2147483648
        %v933 = vsel %vm931, %v932, %v923
        %v934 = vsel %vm927, %v930, %v933
        %v935 = vsel %vm924, nan, %v934
        %v936 = vand.u32 2147483647, %v207
        %vm937 = vcmp.le.f32.partialorder %v936, 0.7853982
        %vm938 = vcmp.lt.s32.totalorder %v207, 0
        %v939 = vand.u32 %v207, 2139095040
        %v940 = vshrl.u32 %v939, 23
        %v941 = vsub.s32 %v940, 127
        %v942 = vand.u32 2147483647, %v207
        %v943 = vand.u32 %v942, 8388607
        %v944 = vor.u32 %v943, 8388608
        %v945 = vsub.s32 0, %v944
        %v946 = vadd.s32 %v941, 1
        %vm947 = vcmp.gt.s32.totalorder %v946, 0
        %v948 = vsel %vm947, %v946, 0
        %v949 = vshrl.u32 %v948, 5
        %v950 = vand.u32 %v948, 31
        %v951 = vsub.s32 32, %v950
        %v952 = vshrl.u32 683565275, %v951
        %v953 = vshll.u32 683565275, %v950
        %v954 = vshrl.u32 2475754826, %v951
        %v955 = vor.u32 %v953, %v954
        %v956 = vshll.u32 2475754826, %v950
        %v957 = vshrl.u32 2131351028, %v951
        %v958 = vor.u32 %v956, %v957
        %v959 = vshll.u32 2131351028, %v950
        %v960 = vshrl.u32 2102212464, %v951
        %v961 = vor.u32 %v959, %v960
        %v962 = vshll.u32 2102212464, %v950
        %v963 = vshrl.u32 920167782, %v951
        %v964 = vor.u32 %v962, %v963
        %v965 = vshll.u32 920167782, %v950
        %v966 = vshrl.u32 1326507024, %v951
        %v967 = vor.u32 %v965, %v966
        %vm968 = vcmp.lt.s32.totalorder %v949, 1
        %vm969 = vcmp.lt.s32.totalorder %v949, 2
        %vm970 = vcmp.lt.s32.totalorder %v949, 3
        %vm971 = vcmp.lt.s32.totalorder %v949, 4
        %v972 = vsel %vm968, %v952, %v955
        %v973 = vsel %vm971, %v961, 2102212464
        %v974 = vsel %vm970, %v958, %v973
        %v975 = vsel %vm969, %v972, %v974
        %v976 = vsel %vm968, %v955, %v958
        %v977 = vsel %vm971, %v964, 920167782
        %v978 = vsel %vm970, %v961, %v977
        %v979 = vsel %vm969, %v976, %v978
        %v980 = vsel %vm968, %v958, %v961
        %v981 = vsel %vm971, %v967, 1326507024
        %v982 = vsel %vm970, %v964, %v981
        %v983 = vsel %vm969, %v980, %v982
        %v984 = vshll.u32 %v944, 8
        %v985 = vmul.u32.u64.compose %v984, %v983
        %v986 = vextract.low.u32 %v985
        %v987 = vextract.high.u32 %v985
        %v988 = vmul.u32.u64.compose %v984, %v979
        %v989 = vextract.low.u32 %v988
        %v990 = vextract.high.u32 %v988
        %v991 = vmul.u32 %v984, %v975
        %v992 = vadd.s32 %v987, %v989
        %vm993 = vc.u32 %v987, %v989
        %v994 = vadd.s32 %v990, 1
        %v995 = vsel %vm993, %v994, %v990
        %v996 = vadd.s32 %v991, %v995
        %v997 = vadd.s32 %v996, 536870912
        %v998 = vshrl.u32 %v997, 30
        %v999 = vshll.u32 %v998, 30
        %v1000 = vsub.s32 %v996, %v999
        %vm1001 = vcmp.lt.s32.totalorder %v1000, 0
        %v1002 = vsub.s32 0, %v1000
        %v1003 = vsel %vm1001, %v1002, %v1000
        %v1004 = vclz %v1003
        %v1005 = vsub.s32 %v1004, 2
        %vm1006 = vcmp.gt.s32.totalorder 0, %v1005
        %v1007 = vsel %vm1006, 0, %v1005
        %v1008 = vsub.s32 32, %v1007
        %v1009 = vshll.u32 %v1000, %v1007
        %v1010 = vshrl.u32 %v992, %v1008
        %v1011 = vor.u32 %v1009, %v1010
        %v1012 = vsub.s32 4294967266, %v1007
        %v1013 = vadd.s32 %v1012, 127
        %v1014 = vshll.u32 %v1013, 23
        %v1015 = vor.u32 4788187, %v1014
        %v1016 = vand.u32 2147483647, %v1015
        %v1018 = vcvt.s32.f32 %v1011
        %v1019 = vmul.f32 %v1018, %v1016
        %v1020 = vxor.u32 %v1019, 2147483648
        %v1021 = vsel %vm938, %v1020, %v1019
        %v1022 = vsub.s32 4, %v998
        %v1023 = vsel %vm938, %v1022, %v998
        %v1024 = vsel %vm937, %v207, %v1021
        %v1025 = vsel %vm937, 0, %v1023
        %v1026 = vcosq.f32.pop %v1024
        %v1027 = vsinq.f32.pop %v1024
        %vm1028 = vweird.f32 %v207
        %v1029 = vadd.s32 %v1025, 3
        %v1030 = vand.u32 %v1029, 3
        %vm1031 = vcmp.lt.s32.totalorder %v1030, 2
        %vm1032 = vcmp.eq.s32.totalorder %v1030, 0
        %v1033 = vxor.u32 %v1027, 2147483648
        %v1034 = vsel %vm1032, %v1026, %v1033
        %vm1035 = vcmp.eq.s32.totalorder %v1030, 2
        %v1036 = vxor.u32 %v1026, 2147483648
        %v1037 = vsel %vm1035, %v1036, %v1027
        %v1038 = vsel %vm1031, %v1034, %v1037
        %v1039 = vsel %vm1028, nan, %v1038
        %1040 = vst [vmem:[%s137] sm:$0xff] %v311
        %1041 = vst [vmem:[%s137 + $0x10] sm:$0xff] %v415
        %1042 = vst [vmem:[%s137 + $0x20] sm:$0xff] %v519
        %1043 = vst [vmem:[%s137 + $0x30] sm:$0xff] %v623
        %1044 = vst [vmem:[%s137 + $0x40] sm:$0xff] %v727
        %1045 = vst [vmem:[%s137 + $0x50] sm:$0xff] %v831
        %1046 = vst [vmem:[%s137 + $0x60] sm:$0xff] %v935
        %1047 = vst [vmem:[%s137 + $0x70] sm:$0xff] %v1039
        %v1048 = vand.u32 2147483647, %v200
        %vm1049 = vcmp.le.f32.partialorder %v1048, 0.7853982
        %vm1050 = vcmp.lt.s32.totalorder %v200, 0
        %v1051 = vand.u32 %v200, 2139095040
        %v1052 = vshrl.u32 %v1051, 23
        %v1053 = vsub.s32 %v1052, 127
        %v1054 = vand.u32 2147483647, %v200
        %v1055 = vand.u32 %v1054, 8388607
        %v1056 = vor.u32 %v1055, 8388608
        %v1057 = vsub.s32 0, %v1056
        %v1058 = vadd.s32 %v1053, 1
        %vm1059 = vcmp.gt.s32.totalorder %v1058, 0
        %v1060 = vsel %vm1059, %v1058, 0
        %v1061 = vshrl.u32 %v1060, 5
        %v1062 = vand.u32 %v1060, 31
        %v1063 = vsub.s32 32, %v1062
        %v1064 = vshrl.u32 683565275, %v1063
        %v1065 = vshll.u32 683565275, %v1062
        %v1066 = vshrl.u32 2475754826, %v1063
        %v1067 = vor.u32 %v1065, %v1066
        %v1068 = vshll.u32 2475754826, %v1062
        %v1069 = vshrl.u32 2131351028, %v1063
        %v1070 = vor.u32 %v1068, %v1069
        %v1071 = vshll.u32 2131351028, %v1062
        %v1072 = vshrl.u32 2102212464, %v1063
        %v1073 = vor.u32 %v1071, %v1072
        %v1074 = vshll.u32 2102212464, %v1062
        %v1075 = vshrl.u32 920167782, %v1063
        %v1076 = vor.u32 %v1074, %v1075
        %v1077 = vshll.u32 920167782, %v1062
        %v1078 = vshrl.u32 1326507024, %v1063
        %v1079 = vor.u32 %v1077, %v1078
        %vm1080 = vcmp.lt.s32.totalorder %v1061, 1
        %vm1081 = vcmp.lt.s32.totalorder %v1061, 2
        %vm1082 = vcmp.lt.s32.totalorder %v1061, 3
        %vm1083 = vcmp.lt.s32.totalorder %v1061, 4
        %v1084 = vsel %vm1080, %v1064, %v1067
        %v1085 = vsel %vm1083, %v1073, 2102212464
        %v1086 = vsel %vm1082, %v1070, %v1085
        %v1087 = vsel %vm1081, %v1084, %v1086
        %v1088 = vsel %vm1080, %v1067, %v1070
        %v1089 = vsel %vm1083, %v1076, 920167782
        %v1090 = vsel %vm1082, %v1073, %v1089
        %v1091 = vsel %vm1081, %v1088, %v1090
        %v1092 = vsel %vm1080, %v1070, %v1073
        %v1093 = vsel %vm1083, %v1079, 1326507024
        %v1094 = vsel %vm1082, %v1076, %v1093
        %v1095 = vsel %vm1081, %v1092, %v1094
        %v1096 = vshll.u32 %v1056, 8
        %v1097 = vmul.u32.u64.compose %v1096, %v1095
        %v1098 = vextract.low.u32 %v1097
        %v1099 = vextract.high.u32 %v1097
        %v1100 = vmul.u32.u64.compose %v1096, %v1091
        %v1101 = vextract.low.u32 %v1100
        %v1102 = vextract.high.u32 %v1100
        %v1103 = vmul.u32 %v1096, %v1087
        %v1104 = vadd.s32 %v1099, %v1101
        %vm1105 = vc.u32 %v1099, %v1101
        %v1106 = vadd.s32 %v1102, 1
        %v1107 = vsel %vm1105, %v1106, %v1102
        %v1108 = vadd.s32 %v1103, %v1107
        %v1109 = vadd.s32 %v1108, 536870912
        %v1110 = vshrl.u32 %v1109, 30
        %v1111 = vshll.u32 %v1110, 30
        %v1112 = vsub.s32 %v1108, %v1111
        %vm1113 = vcmp.lt.s32.totalorder %v1112, 0
        %v1114 = vsub.s32 0, %v1112
        %v1115 = vsel %vm1113, %v1114, %v1112
        %v1116 = vclz %v1115
        %v1117 = vsub.s32 %v1116, 2
        %vm1118 = vcmp.gt.s32.totalorder 0, %v1117
        %v1119 = vsel %vm1118, 0, %v1117
        %v1120 = vsub.s32 32, %v1119
        %v1121 = vshll.u32 %v1112, %v1119
        %v1122 = vshrl.u32 %v1104, %v1120
        %v1123 = vor.u32 %v1121, %v1122
        %v1124 = vsub.s32 4294967266, %v1119
        %v1125 = vadd.s32 %v1124, 127
        %v1126 = vshll.u32 %v1125, 23
        %v1127 = vor.u32 4788187, %v1126
        %v1128 = vand.u32 2147483647, %v1127
        %v1130 = vcvt.s32.f32 %v1123
        %v1131 = vmul.f32 %v1130, %v1128
        %v1132 = vxor.u32 %v1131, 2147483648
        %v1133 = vsel %vm1050, %v1132, %v1131
        %v1134 = vsub.s32 4, %v1110
        %v1135 = vsel %vm1050, %v1134, %v1110
        %v1136 = vsel %vm1049, %v200, %v1133
        %v1137 = vsel %vm1049, 0, %v1135
        %v1138 = vcosq.f32.pop %v1136
        %v1139 = vsinq.f32.pop %v1136
        %vm1140 = vweird.f32 %v200
        %v1141 = vand.u32 %v1137, 3
        %vm1142 = vcmp.lt.s32.totalorder %v1141, 2
        %vm1143 = vcmp.eq.s32.totalorder %v1141, 0
        %v1144 = vxor.u32 %v1139, 2147483648
        %v1145 = vsel %vm1143, %v1138, %v1144
        %vm1146 = vcmp.eq.s32.totalorder %v1141, 2
        %v1147 = vxor.u32 %v1138, 2147483648
        %v1148 = vsel %vm1146, %v1147, %v1139
        %v1149 = vsel %vm1142, %v1145, %v1148
        %v1150 = vsel %vm1140, nan, %v1149
        %v1151 = vand.u32 2147483647, %v201
        %vm1152 = vcmp.le.f32.partialorder %v1151, 0.7853982
        %vm1153 = vcmp.lt.s32.totalorder %v201, 0
        %v1154 = vand.u32 %v201, 2139095040
        %v1155 = vshrl.u32 %v1154, 23
        %v1156 = vsub.s32 %v1155, 127
        %v1157 = vand.u32 2147483647, %v201
        %v1158 = vand.u32 %v1157, 8388607
        %v1159 = vor.u32 %v1158, 8388608
        %v1160 = vsub.s32 0, %v1159
        %v1161 = vadd.s32 %v1156, 1
        %vm1162 = vcmp.gt.s32.totalorder %v1161, 0
        %v1163 = vsel %vm1162, %v1161, 0
        %v1164 = vshrl.u32 %v1163, 5
        %v1165 = vand.u32 %v1163, 31
        %v1166 = vsub.s32 32, %v1165
        %v1167 = vshrl.u32 683565275, %v1166
        %v1168 = vshll.u32 683565275, %v1165
        %v1169 = vshrl.u32 2475754826, %v1166
        %v1170 = vor.u32 %v1168, %v1169
        %v1171 = vshll.u32 2475754826, %v1165
        %v1172 = vshrl.u32 2131351028, %v1166
        %v1173 = vor.u32 %v1171, %v1172
        %v1174 = vshll.u32 2131351028, %v1165
        %v1175 = vshrl.u32 2102212464, %v1166
        %v1176 = vor.u32 %v1174, %v1175
        %v1177 = vshll.u32 2102212464, %v1165
        %v1178 = vshrl.u32 920167782, %v1166
        %v1179 = vor.u32 %v1177, %v1178
        %v1180 = vshll.u32 920167782, %v1165
        %v1181 = vshrl.u32 1326507024, %v1166
        %v1182 = vor.u32 %v1180, %v1181
        %vm1183 = vcmp.lt.s32.totalorder %v1164, 1
        %vm1184 = vcmp.lt.s32.totalorder %v1164, 2
        %vm1185 = vcmp.lt.s32.totalorder %v1164, 3
        %vm1186 = vcmp.lt.s32.totalorder %v1164, 4
        %v1187 = vsel %vm1183, %v1167, %v1170
        %v1188 = vsel %vm1186, %v1176, 2102212464
        %v1189 = vsel %vm1185, %v1173, %v1188
        %v1190 = vsel %vm1184, %v1187, %v1189
        %v1191 = vsel %vm1183, %v1170, %v1173
        %v1192 = vsel %vm1186, %v1179, 920167782
        %v1193 = vsel %vm1185, %v1176, %v1192
        %v1194 = vsel %vm1184, %v1191, %v1193
        %v1195 = vsel %vm1183, %v1173, %v1176
        %v1196 = vsel %vm1186, %v1182, 1326507024
        %v1197 = vsel %vm1185, %v1179, %v1196
        %v1198 = vsel %vm1184, %v1195, %v1197
        %v1199 = vshll.u32 %v1159, 8
        %v1200 = vmul.u32.u64.compose %v1199, %v1198
        %v1201 = vextract.low.u32 %v1200
        %v1202 = vextract.high.u32 %v1200
        %v1203 = vmul.u32.u64.compose %v1199, %v1194
        %v1204 = vextract.low.u32 %v1203
        %v1205 = vextract.high.u32 %v1203
        %v1206 = vmul.u32 %v1199, %v1190
        %v1207 = vadd.s32 %v1202, %v1204
        %vm1208 = vc.u32 %v1202, %v1204
        %v1209 = vadd.s32 %v1205, 1
        %v1210 = vsel %vm1208, %v1209, %v1205
        %v1211 = vadd.s32 %v1206, %v1210
        %v1212 = vadd.s32 %v1211, 536870912
        %v1213 = vshrl.u32 %v1212, 30
        %v1214 = vshll.u32 %v1213, 30
        %v1215 = vsub.s32 %v1211, %v1214
        %vm1216 = vcmp.lt.s32.totalorder %v1215, 0
        %v1217 = vsub.s32 0, %v1215
        %v1218 = vsel %vm1216, %v1217, %v1215
        %v1219 = vclz %v1218
        %v1220 = vsub.s32 %v1219, 2
        %vm1221 = vcmp.gt.s32.totalorder 0, %v1220
        %v1222 = vsel %vm1221, 0, %v1220
        %v1223 = vsub.s32 32, %v1222
        %v1224 = vshll.u32 %v1215, %v1222
        %v1225 = vshrl.u32 %v1207, %v1223
        %v1226 = vor.u32 %v1224, %v1225
        %v1227 = vsub.s32 4294967266, %v1222
        %v1228 = vadd.s32 %v1227, 127
        %v1229 = vshll.u32 %v1228, 23
        %v1230 = vor.u32 4788187, %v1229
        %v1231 = vand.u32 2147483647, %v1230
        %v1233 = vcvt.s32.f32 %v1226
        %v1234 = vmul.f32 %v1233, %v1231
        %v1235 = vxor.u32 %v1234, 2147483648
        %v1236 = vsel %vm1153, %v1235, %v1234
        %v1237 = vsub.s32 4, %v1213
        %v1238 = vsel %vm1153, %v1237, %v1213
        %v1239 = vsel %vm1152, %v201, %v1236
        %v1240 = vsel %vm1152, 0, %v1238
        %v1241 = vcosq.f32.pop %v1239
        %v1242 = vsinq.f32.pop %v1239
        %vm1243 = vweird.f32 %v201
        %v1244 = vand.u32 %v1240, 3
        %vm1245 = vcmp.lt.s32.totalorder %v1244, 2
        %vm1246 = vcmp.eq.s32.totalorder %v1244, 0
        %v1247 = vxor.u32 %v1242, 2147483648
        %v1248 = vsel %vm1246, %v1241, %v1247
        %vm1249 = vcmp.eq.s32.totalorder %v1244, 2
        %v1250 = vxor.u32 %v1241, 2147483648
        %v1251 = vsel %vm1249, %v1250, %v1242
        %v1252 = vsel %vm1245, %v1248, %v1251
        %v1253 = vsel %vm1243, nan, %v1252
        %v1254 = vand.u32 2147483647, %v202
        %vm1255 = vcmp.le.f32.partialorder %v1254, 0.7853982
        %vm1256 = vcmp.lt.s32.totalorder %v202, 0
        %v1257 = vand.u32 %v202, 2139095040
        %v1258 = vshrl.u32 %v1257, 23
        %v1259 = vsub.s32 %v1258, 127
        %v1260 = vand.u32 2147483647, %v202
        %v1261 = vand.u32 %v1260, 8388607
        %v1262 = vor.u32 %v1261, 8388608
        %v1263 = vsub.s32 0, %v1262
        %v1264 = vadd.s32 %v1259, 1
        %vm1265 = vcmp.gt.s32.totalorder %v1264, 0
        %v1266 = vsel %vm1265, %v1264, 0
        %v1267 = vshrl.u32 %v1266, 5
        %v1268 = vand.u32 %v1266, 31
        %v1269 = vsub.s32 32, %v1268
        %v1270 = vshrl.u32 683565275, %v1269
        %v1271 = vshll.u32 683565275, %v1268
        %v1272 = vshrl.u32 2475754826, %v1269
        %v1273 = vor.u32 %v1271, %v1272
        %v1274 = vshll.u32 2475754826, %v1268
        %v1275 = vshrl.u32 2131351028, %v1269
        %v1276 = vor.u32 %v1274, %v1275
        %v1277 = vshll.u32 2131351028, %v1268
        %v1278 = vshrl.u32 2102212464, %v1269
        %v1279 = vor.u32 %v1277, %v1278
        %v1280 = vshll.u32 2102212464, %v1268
        %v1281 = vshrl.u32 920167782, %v1269
        %v1282 = vor.u32 %v1280, %v1281
        %v1283 = vshll.u32 920167782, %v1268
        %v1284 = vshrl.u32 1326507024, %v1269
        %v1285 = vor.u32 %v1283, %v1284
        %vm1286 = vcmp.lt.s32.totalorder %v1267, 1
        %vm1287 = vcmp.lt.s32.totalorder %v1267, 2
        %vm1288 = vcmp.lt.s32.totalorder %v1267, 3
        %vm1289 = vcmp.lt.s32.totalorder %v1267, 4
        %v1290 = vsel %vm1286, %v1270, %v1273
        %v1291 = vsel %vm1289, %v1279, 2102212464
        %v1292 = vsel %vm1288, %v1276, %v1291
        %v1293 = vsel %vm1287, %v1290, %v1292
        %v1294 = vsel %vm1286, %v1273, %v1276
        %v1295 = vsel %vm1289, %v1282, 920167782
        %v1296 = vsel %vm1288, %v1279, %v1295
        %v1297 = vsel %vm1287, %v1294, %v1296
        %v1298 = vsel %vm1286, %v1276, %v1279
        %v1299 = vsel %vm1289, %v1285, 1326507024
        %v1300 = vsel %vm1288, %v1282, %v1299
        %v1301 = vsel %vm1287, %v1298, %v1300
        %v1302 = vshll.u32 %v1262, 8
        %v1303 = vmul.u32.u64.compose %v1302, %v1301
        %v1304 = vextract.low.u32 %v1303
        %v1305 = vextract.high.u32 %v1303
        %v1306 = vmul.u32.u64.compose %v1302, %v1297
        %v1307 = vextract.low.u32 %v1306
        %v1308 = vextract.high.u32 %v1306
        %v1309 = vmul.u32 %v1302, %v1293
        %v1310 = vadd.s32 %v1305, %v1307
        %vm1311 = vc.u32 %v1305, %v1307
        %v1312 = vadd.s32 %v1308, 1
        %v1313 = vsel %vm1311, %v1312, %v1308
        %v1314 = vadd.s32 %v1309, %v1313
        %v1315 = vadd.s32 %v1314, 536870912
        %v1316 = vshrl.u32 %v1315, 30
        %v1317 = vshll.u32 %v1316, 30
        %v1318 = vsub.s32 %v1314, %v1317
        %vm1319 = vcmp.lt.s32.totalorder %v1318, 0
        %v1320 = vsub.s32 0, %v1318
        %v1321 = vsel %vm1319, %v1320, %v1318
        %v1322 = vclz %v1321
        %v1323 = vsub.s32 %v1322, 2
        %vm1324 = vcmp.gt.s32.totalorder 0, %v1323
        %v1325 = vsel %vm1324, 0, %v1323
        %v1326 = vsub.s32 32, %v1325
        %v1327 = vshll.u32 %v1318, %v1325
        %v1328 = vshrl.u32 %v1310, %v1326
        %v1329 = vor.u32 %v1327, %v1328
        %v1330 = vsub.s32 4294967266, %v1325
        %v1331 = vadd.s32 %v1330, 127
        %v1332 = vshll.u32 %v1331, 23
        %v1333 = vor.u32 4788187, %v1332
        %v1334 = vand.u32 2147483647, %v1333
        %v1336 = vcvt.s32.f32 %v1329
        %v1337 = vmul.f32 %v1336, %v1334
        %v1338 = vxor.u32 %v1337, 2147483648
        %v1339 = vsel %vm1256, %v1338, %v1337
        %v1340 = vsub.s32 4, %v1316
        %v1341 = vsel %vm1256, %v1340, %v1316
        %v1342 = vsel %vm1255, %v202, %v1339
        %v1343 = vsel %vm1255, 0, %v1341
        %v1344 = vcosq.f32.pop %v1342
        %v1345 = vsinq.f32.pop %v1342
        %vm1346 = vweird.f32 %v202
        %v1347 = vand.u32 %v1343, 3
        %vm1348 = vcmp.lt.s32.totalorder %v1347, 2
        %vm1349 = vcmp.eq.s32.totalorder %v1347, 0
        %v1350 = vxor.u32 %v1345, 2147483648
        %v1351 = vsel %vm1349, %v1344, %v1350
        %vm1352 = vcmp.eq.s32.totalorder %v1347, 2
        %v1353 = vxor.u32 %v1344, 2147483648
        %v1354 = vsel %vm1352, %v1353, %v1345
        %v1355 = vsel %vm1348, %v1351, %v1354
        %v1356 = vsel %vm1346, nan, %v1355
        %v1357 = vand.u32 2147483647, %v203
        %vm1358 = vcmp.le.f32.partialorder %v1357, 0.7853982
        %vm1359 = vcmp.lt.s32.totalorder %v203, 0
        %v1360 = vand.u32 %v203, 2139095040
        %v1361 = vshrl.u32 %v1360, 23
        %v1362 = vsub.s32 %v1361, 127
        %v1363 = vand.u32 2147483647, %v203
        %v1364 = vand.u32 %v1363, 8388607
        %v1365 = vor.u32 %v1364, 8388608
        %v1366 = vsub.s32 0, %v1365
        %v1367 = vadd.s32 %v1362, 1
        %vm1368 = vcmp.gt.s32.totalorder %v1367, 0
        %v1369 = vsel %vm1368, %v1367, 0
        %v1370 = vshrl.u32 %v1369, 5
        %v1371 = vand.u32 %v1369, 31
        %v1372 = vsub.s32 32, %v1371
        %v1373 = vshrl.u32 683565275, %v1372
        %v1374 = vshll.u32 683565275, %v1371
        %v1375 = vshrl.u32 2475754826, %v1372
        %v1376 = vor.u32 %v1374, %v1375
        %v1377 = vshll.u32 2475754826, %v1371
        %v1378 = vshrl.u32 2131351028, %v1372
        %v1379 = vor.u32 %v1377, %v1378
        %v1380 = vshll.u32 2131351028, %v1371
        %v1381 = vshrl.u32 2102212464, %v1372
        %v1382 = vor.u32 %v1380, %v1381
        %v1383 = vshll.u32 2102212464, %v1371
        %v1384 = vshrl.u32 920167782, %v1372
        %v1385 = vor.u32 %v1383, %v1384
        %v1386 = vshll.u32 920167782, %v1371
        %v1387 = vshrl.u32 1326507024, %v1372
        %v1388 = vor.u32 %v1386, %v1387
        %vm1389 = vcmp.lt.s32.totalorder %v1370, 1
        %vm1390 = vcmp.lt.s32.totalorder %v1370, 2
        %vm1391 = vcmp.lt.s32.totalorder %v1370, 3
        %vm1392 = vcmp.lt.s32.totalorder %v1370, 4
        %v1393 = vsel %vm1389, %v1373, %v1376
        %v1394 = vsel %vm1392, %v1382, 2102212464
        %v1395 = vsel %vm1391, %v1379, %v1394
        %v1396 = vsel %vm1390, %v1393, %v1395
        %v1397 = vsel %vm1389, %v1376, %v1379
        %v1398 = vsel %vm1392, %v1385, 920167782
        %v1399 = vsel %vm1391, %v1382, %v1398
        %v1400 = vsel %vm1390, %v1397, %v1399
        %v1401 = vsel %vm1389, %v1379, %v1382
        %v1402 = vsel %vm1392, %v1388, 1326507024
        %v1403 = vsel %vm1391, %v1385, %v1402
        %v1404 = vsel %vm1390, %v1401, %v1403
        %v1405 = vshll.u32 %v1365, 8
        %v1406 = vmul.u32.u64.compose %v1405, %v1404
        %v1407 = vextract.low.u32 %v1406
        %v1408 = vextract.high.u32 %v1406
        %v1409 = vmul.u32.u64.compose %v1405, %v1400
        %v1410 = vextract.low.u32 %v1409
        %v1411 = vextract.high.u32 %v1409
        %v1412 = vmul.u32 %v1405, %v1396
        %v1413 = vadd.s32 %v1408, %v1410
        %vm1414 = vc.u32 %v1408, %v1410
        %v1415 = vadd.s32 %v1411, 1
        %v1416 = vsel %vm1414, %v1415, %v1411
        %v1417 = vadd.s32 %v1412, %v1416
        %v1418 = vadd.s32 %v1417, 536870912
        %v1419 = vshrl.u32 %v1418, 30
        %v1420 = vshll.u32 %v1419, 30
        %v1421 = vsub.s32 %v1417, %v1420
        %vm1422 = vcmp.lt.s32.totalorder %v1421, 0
        %v1423 = vsub.s32 0, %v1421
        %v1424 = vsel %vm1422, %v1423, %v1421
        %v1425 = vclz %v1424
        %v1426 = vsub.s32 %v1425, 2
        %vm1427 = vcmp.gt.s32.totalorder 0, %v1426
        %v1428 = vsel %vm1427, 0, %v1426
        %v1429 = vsub.s32 32, %v1428
        %v1430 = vshll.u32 %v1421, %v1428
        %v1431 = vshrl.u32 %v1413, %v1429
        %v1432 = vor.u32 %v1430, %v1431
        %v1433 = vsub.s32 4294967266, %v1428
        %v1434 = vadd.s32 %v1433, 127
        %v1435 = vshll.u32 %v1434, 23
        %v1436 = vor.u32 4788187, %v1435
        %v1437 = vand.u32 2147483647, %v1436
        %v1439 = vcvt.s32.f32 %v1432
        %v1440 = vmul.f32 %v1439, %v1437
        %v1441 = vxor.u32 %v1440, 2147483648
        %v1442 = vsel %vm1359, %v1441, %v1440
        %v1443 = vsub.s32 4, %v1419
        %v1444 = vsel %vm1359, %v1443, %v1419
        %v1445 = vsel %vm1358, %v203, %v1442
        %v1446 = vsel %vm1358, 0, %v1444
        %v1447 = vcosq.f32.pop %v1445
        %v1448 = vsinq.f32.pop %v1445
        %vm1449 = vweird.f32 %v203
        %v1450 = vand.u32 %v1446, 3
        %vm1451 = vcmp.lt.s32.totalorder %v1450, 2
        %vm1452 = vcmp.eq.s32.totalorder %v1450, 0
        %v1453 = vxor.u32 %v1448, 2147483648
        %v1454 = vsel %vm1452, %v1447, %v1453
        %vm1455 = vcmp.eq.s32.totalorder %v1450, 2
        %v1456 = vxor.u32 %v1447, 2147483648
        %v1457 = vsel %vm1455, %v1456, %v1448
        %v1458 = vsel %vm1451, %v1454, %v1457
        %v1459 = vsel %vm1449, nan, %v1458
        %v1460 = vand.u32 2147483647, %v204
        %vm1461 = vcmp.le.f32.partialorder %v1460, 0.7853982
        %vm1462 = vcmp.lt.s32.totalorder %v204, 0
        %v1463 = vand.u32 %v204, 2139095040
        %v1464 = vshrl.u32 %v1463, 23
        %v1465 = vsub.s32 %v1464, 127
        %v1466 = vand.u32 2147483647, %v204
        %v1467 = vand.u32 %v1466, 8388607
        %v1468 = vor.u32 %v1467, 8388608
        %v1469 = vsub.s32 0, %v1468
        %v1470 = vadd.s32 %v1465, 1
        %vm1471 = vcmp.gt.s32.totalorder %v1470, 0
        %v1472 = vsel %vm1471, %v1470, 0
        %v1473 = vshrl.u32 %v1472, 5
        %v1474 = vand.u32 %v1472, 31
        %v1475 = vsub.s32 32, %v1474
        %v1476 = vshrl.u32 683565275, %v1475
        %v1477 = vshll.u32 683565275, %v1474
        %v1478 = vshrl.u32 2475754826, %v1475
        %v1479 = vor.u32 %v1477, %v1478
        %v1480 = vshll.u32 2475754826, %v1474
        %v1481 = vshrl.u32 2131351028, %v1475
        %v1482 = vor.u32 %v1480, %v1481
        %v1483 = vshll.u32 2131351028, %v1474
        %v1484 = vshrl.u32 2102212464, %v1475
        %v1485 = vor.u32 %v1483, %v1484
        %v1486 = vshll.u32 2102212464, %v1474
        %v1487 = vshrl.u32 920167782, %v1475
        %v1488 = vor.u32 %v1486, %v1487
        %v1489 = vshll.u32 920167782, %v1474
        %v1490 = vshrl.u32 1326507024, %v1475
        %v1491 = vor.u32 %v1489, %v1490
        %vm1492 = vcmp.lt.s32.totalorder %v1473, 1
        %vm1493 = vcmp.lt.s32.totalorder %v1473, 2
        %vm1494 = vcmp.lt.s32.totalorder %v1473, 3
        %vm1495 = vcmp.lt.s32.totalorder %v1473, 4
        %v1496 = vsel %vm1492, %v1476, %v1479
        %v1497 = vsel %vm1495, %v1485, 2102212464
        %v1498 = vsel %vm1494, %v1482, %v1497
        %v1499 = vsel %vm1493, %v1496, %v1498
        %v1500 = vsel %vm1492, %v1479, %v1482
        %v1501 = vsel %vm1495, %v1488, 920167782
        %v1502 = vsel %vm1494, %v1485, %v1501
        %v1503 = vsel %vm1493, %v1500, %v1502
        %v1504 = vsel %vm1492, %v1482, %v1485
        %v1505 = vsel %vm1495, %v1491, 1326507024
        %v1506 = vsel %vm1494, %v1488, %v1505
        %v1507 = vsel %vm1493, %v1504, %v1506
        %v1508 = vshll.u32 %v1468, 8
        %v1509 = vmul.u32.u64.compose %v1508, %v1507
        %v1510 = vextract.low.u32 %v1509
        %v1511 = vextract.high.u32 %v1509
        %v1512 = vmul.u32.u64.compose %v1508, %v1503
        %v1513 = vextract.low.u32 %v1512
        %v1514 = vextract.high.u32 %v1512
        %v1515 = vmul.u32 %v1508, %v1499
        %v1516 = vadd.s32 %v1511, %v1513
        %vm1517 = vc.u32 %v1511, %v1513
        %v1518 = vadd.s32 %v1514, 1
        %v1519 = vsel %vm1517, %v1518, %v1514
        %v1520 = vadd.s32 %v1515, %v1519
        %v1521 = vadd.s32 %v1520, 536870912
        %v1522 = vshrl.u32 %v1521, 30
        %v1523 = vshll.u32 %v1522, 30
        %v1524 = vsub.s32 %v1520, %v1523
        %vm1525 = vcmp.lt.s32.totalorder %v1524, 0
        %v1526 = vsub.s32 0, %v1524
        %v1527 = vsel %vm1525, %v1526, %v1524
        %v1528 = vclz %v1527
        %v1529 = vsub.s32 %v1528, 2
        %vm1530 = vcmp.gt.s32.totalorder 0, %v1529
        %v1531 = vsel %vm1530, 0, %v1529
        %v1532 = vsub.s32 32, %v1531
        %v1533 = vshll.u32 %v1524, %v1531
        %v1534 = vshrl.u32 %v1516, %v1532
        %v1535 = vor.u32 %v1533, %v1534
        %v1536 = vsub.s32 4294967266, %v1531
        %v1537 = vadd.s32 %v1536, 127
        %v1538 = vshll.u32 %v1537, 23
        %v1539 = vor.u32 4788187, %v1538
        %v1540 = vand.u32 2147483647, %v1539
        %v1542 = vcvt.s32.f32 %v1535
        %v1543 = vmul.f32 %v1542, %v1540
        %v1544 = vxor.u32 %v1543, 2147483648
        %v1545 = vsel %vm1462, %v1544, %v1543
        %v1546 = vsub.s32 4, %v1522
        %v1547 = vsel %vm1462, %v1546, %v1522
        %v1548 = vsel %vm1461, %v204, %v1545
        %v1549 = vsel %vm1461, 0, %v1547
        %v1550 = vcosq.f32.pop %v1548
        %v1551 = vsinq.f32.pop %v1548
        %vm1552 = vweird.f32 %v204
        %v1553 = vand.u32 %v1549, 3
        %vm1554 = vcmp.lt.s32.totalorder %v1553, 2
        %vm1555 = vcmp.eq.s32.totalorder %v1553, 0
        %v1556 = vxor.u32 %v1551, 2147483648
        %v1557 = vsel %vm1555, %v1550, %v1556
        %vm1558 = vcmp.eq.s32.totalorder %v1553, 2
        %v1559 = vxor.u32 %v1550, 2147483648
        %v1560 = vsel %vm1558, %v1559, %v1551
        %v1561 = vsel %vm1554, %v1557, %v1560
        %v1562 = vsel %vm1552, nan, %v1561
        %v1563 = vand.u32 2147483647, %v205
        %vm1564 = vcmp.le.f32.partialorder %v1563, 0.7853982
        %vm1565 = vcmp.lt.s32.totalorder %v205, 0
        %v1566 = vand.u32 %v205, 2139095040
        %v1567 = vshrl.u32 %v1566, 23
        %v1568 = vsub.s32 %v1567, 127
        %v1569 = vand.u32 2147483647, %v205
        %v1570 = vand.u32 %v1569, 8388607
        %v1571 = vor.u32 %v1570, 8388608
        %v1572 = vsub.s32 0, %v1571
        %v1573 = vadd.s32 %v1568, 1
        %vm1574 = vcmp.gt.s32.totalorder %v1573, 0
        %v1575 = vsel %vm1574, %v1573, 0
        %v1576 = vshrl.u32 %v1575, 5
        %v1577 = vand.u32 %v1575, 31
        %v1578 = vsub.s32 32, %v1577
        %v1579 = vshrl.u32 683565275, %v1578
        %v1580 = vshll.u32 683565275, %v1577
        %v1581 = vshrl.u32 2475754826, %v1578
        %v1582 = vor.u32 %v1580, %v1581
        %v1583 = vshll.u32 2475754826, %v1577
        %v1584 = vshrl.u32 2131351028, %v1578
        %v1585 = vor.u32 %v1583, %v1584
        %v1586 = vshll.u32 2131351028, %v1577
        %v1587 = vshrl.u32 2102212464, %v1578
        %v1588 = vor.u32 %v1586, %v1587
        %v1589 = vshll.u32 2102212464, %v1577
        %v1590 = vshrl.u32 920167782, %v1578
        %v1591 = vor.u32 %v1589, %v1590
        %v1592 = vshll.u32 920167782, %v1577
        %v1593 = vshrl.u32 1326507024, %v1578
        %v1594 = vor.u32 %v1592, %v1593
        %vm1595 = vcmp.lt.s32.totalorder %v1576, 1
        %vm1596 = vcmp.lt.s32.totalorder %v1576, 2
        %vm1597 = vcmp.lt.s32.totalorder %v1576, 3
        %vm1598 = vcmp.lt.s32.totalorder %v1576, 4
        %v1599 = vsel %vm1595, %v1579, %v1582
        %v1600 = vsel %vm1598, %v1588, 2102212464
        %v1601 = vsel %vm1597, %v1585, %v1600
        %v1602 = vsel %vm1596, %v1599, %v1601
        %v1603 = vsel %vm1595, %v1582, %v1585
        %v1604 = vsel %vm1598, %v1591, 920167782
        %v1605 = vsel %vm1597, %v1588, %v1604
        %v1606 = vsel %vm1596, %v1603, %v1605
        %v1607 = vsel %vm1595, %v1585, %v1588
        %v1608 = vsel %vm1598, %v1594, 1326507024
        %v1609 = vsel %vm1597, %v1591, %v1608
        %v1610 = vsel %vm1596, %v1607, %v1609
        %v1611 = vshll.u32 %v1571, 8
        %v1612 = vmul.u32.u64.compose %v1611, %v1610
        %v1613 = vextract.low.u32 %v1612
        %v1614 = vextract.high.u32 %v1612
        %v1615 = vmul.u32.u64.compose %v1611, %v1606
        %v1616 = vextract.low.u32 %v1615
        %v1617 = vextract.high.u32 %v1615
        %v1618 = vmul.u32 %v1611, %v1602
        %v1619 = vadd.s32 %v1614, %v1616
        %vm1620 = vc.u32 %v1614, %v1616
        %v1621 = vadd.s32 %v1617, 1
        %v1622 = vsel %vm1620, %v1621, %v1617
        %v1623 = vadd.s32 %v1618, %v1622
        %v1624 = vadd.s32 %v1623, 536870912
        %v1625 = vshrl.u32 %v1624, 30
        %v1626 = vshll.u32 %v1625, 30
        %v1627 = vsub.s32 %v1623, %v1626
        %vm1628 = vcmp.lt.s32.totalorder %v1627, 0
        %v1629 = vsub.s32 0, %v1627
        %v1630 = vsel %vm1628, %v1629, %v1627
        %v1631 = vclz %v1630
        %v1632 = vsub.s32 %v1631, 2
        %vm1633 = vcmp.gt.s32.totalorder 0, %v1632
        %v1634 = vsel %vm1633, 0, %v1632
        %v1635 = vsub.s32 32, %v1634
        %v1636 = vshll.u32 %v1627, %v1634
        %v1637 = vshrl.u32 %v1619, %v1635
        %v1638 = vor.u32 %v1636, %v1637
        %v1639 = vsub.s32 4294967266, %v1634
        %v1640 = vadd.s32 %v1639, 127
        %v1641 = vshll.u32 %v1640, 23
        %v1642 = vor.u32 4788187, %v1641
        %v1643 = vand.u32 2147483647, %v1642
        %v1645 = vcvt.s32.f32 %v1638
        %v1646 = vmul.f32 %v1645, %v1643
        %v1647 = vxor.u32 %v1646, 2147483648
        %v1648 = vsel %vm1565, %v1647, %v1646
        %v1649 = vsub.s32 4, %v1625
        %v1650 = vsel %vm1565, %v1649, %v1625
        %v1651 = vsel %vm1564, %v205, %v1648
        %v1652 = vsel %vm1564, 0, %v1650
        %v1653 = vcosq.f32.pop %v1651
        %v1654 = vsinq.f32.pop %v1651
        %vm1655 = vweird.f32 %v205
        %v1656 = vand.u32 %v1652, 3
        %vm1657 = vcmp.lt.s32.totalorder %v1656, 2
        %vm1658 = vcmp.eq.s32.totalorder %v1656, 0
        %v1659 = vxor.u32 %v1654, 2147483648
        %v1660 = vsel %vm1658, %v1653, %v1659
        %vm1661 = vcmp.eq.s32.totalorder %v1656, 2
        %v1662 = vxor.u32 %v1653, 2147483648
        %v1663 = vsel %vm1661, %v1662, %v1654
        %v1664 = vsel %vm1657, %v1660, %v1663
        %v1665 = vsel %vm1655, nan, %v1664
        %v1666 = vand.u32 2147483647, %v206
        %vm1667 = vcmp.le.f32.partialorder %v1666, 0.7853982
        %vm1668 = vcmp.lt.s32.totalorder %v206, 0
        %v1669 = vand.u32 %v206, 2139095040
        %v1670 = vshrl.u32 %v1669, 23
        %v1671 = vsub.s32 %v1670, 127
        %v1672 = vand.u32 2147483647, %v206
        %v1673 = vand.u32 %v1672, 8388607
        %v1674 = vor.u32 %v1673, 8388608
        %v1675 = vsub.s32 0, %v1674
        %v1676 = vadd.s32 %v1671, 1
        %vm1677 = vcmp.gt.s32.totalorder %v1676, 0
        %v1678 = vsel %vm1677, %v1676, 0
        %v1679 = vshrl.u32 %v1678, 5
        %v1680 = vand.u32 %v1678, 31
        %v1681 = vsub.s32 32, %v1680
        %v1682 = vshrl.u32 683565275, %v1681
        %v1683 = vshll.u32 683565275, %v1680
        %v1684 = vshrl.u32 2475754826, %v1681
        %v1685 = vor.u32 %v1683, %v1684
        %v1686 = vshll.u32 2475754826, %v1680
        %v1687 = vshrl.u32 2131351028, %v1681
        %v1688 = vor.u32 %v1686, %v1687
        %v1689 = vshll.u32 2131351028, %v1680
        %v1690 = vshrl.u32 2102212464, %v1681
        %v1691 = vor.u32 %v1689, %v1690
        %v1692 = vshll.u32 2102212464, %v1680
        %v1693 = vshrl.u32 920167782, %v1681
        %v1694 = vor.u32 %v1692, %v1693
        %v1695 = vshll.u32 920167782, %v1680
        %v1696 = vshrl.u32 1326507024, %v1681
        %v1697 = vor.u32 %v1695, %v1696
        %vm1698 = vcmp.lt.s32.totalorder %v1679, 1
        %vm1699 = vcmp.lt.s32.totalorder %v1679, 2
        %vm1700 = vcmp.lt.s32.totalorder %v1679, 3
        %vm1701 = vcmp.lt.s32.totalorder %v1679, 4
        %v1702 = vsel %vm1698, %v1682, %v1685
        %v1703 = vsel %vm1701, %v1691, 2102212464
        %v1704 = vsel %vm1700, %v1688, %v1703
        %v1705 = vsel %vm1699, %v1702, %v1704
        %v1706 = vsel %vm1698, %v1685, %v1688
        %v1707 = vsel %vm1701, %v1694, 920167782
        %v1708 = vsel %vm1700, %v1691, %v1707
        %v1709 = vsel %vm1699, %v1706, %v1708
        %v1710 = vsel %vm1698, %v1688, %v1691
        %v1711 = vsel %vm1701, %v1697, 1326507024
        %v1712 = vsel %vm1700, %v1694, %v1711
        %v1713 = vsel %vm1699, %v1710, %v1712
        %v1714 = vshll.u32 %v1674, 8
        %v1715 = vmul.u32.u64.compose %v1714, %v1713
        %v1716 = vextract.low.u32 %v1715
        %v1717 = vextract.high.u32 %v1715
        %v1718 = vmul.u32.u64.compose %v1714, %v1709
        %v1719 = vextract.low.u32 %v1718
        %v1720 = vextract.high.u32 %v1718
        %v1721 = vmul.u32 %v1714, %v1705
        %v1722 = vadd.s32 %v1717, %v1719
        %vm1723 = vc.u32 %v1717, %v1719
        %v1724 = vadd.s32 %v1720, 1
        %v1725 = vsel %vm1723, %v1724, %v1720
        %v1726 = vadd.s32 %v1721, %v1725
        %v1727 = vadd.s32 %v1726, 536870912
        %v1728 = vshrl.u32 %v1727, 30
        %v1729 = vshll.u32 %v1728, 30
        %v1730 = vsub.s32 %v1726, %v1729
        %vm1731 = vcmp.lt.s32.totalorder %v1730, 0
        %v1732 = vsub.s32 0, %v1730
        %v1733 = vsel %vm1731, %v1732, %v1730
        %v1734 = vclz %v1733
        %v1735 = vsub.s32 %v1734, 2
        %vm1736 = vcmp.gt.s32.totalorder 0, %v1735
        %v1737 = vsel %vm1736, 0, %v1735
        %v1738 = vsub.s32 32, %v1737
        %v1739 = vshll.u32 %v1730, %v1737
        %v1740 = vshrl.u32 %v1722, %v1738
        %v1741 = vor.u32 %v1739, %v1740
        %v1742 = vsub.s32 4294967266, %v1737
        %v1743 = vadd.s32 %v1742, 127
        %v1744 = vshll.u32 %v1743, 23
        %v1745 = vor.u32 4788187, %v1744
        %v1746 = vand.u32 2147483647, %v1745
        %v1748 = vcvt.s32.f32 %v1741
        %v1749 = vmul.f32 %v1748, %v1746
        %v1750 = vxor.u32 %v1749, 2147483648
        %v1751 = vsel %vm1668, %v1750, %v1749
        %v1752 = vsub.s32 4, %v1728
        %v1753 = vsel %vm1668, %v1752, %v1728
        %v1754 = vsel %vm1667, %v206, %v1751
        %v1755 = vsel %vm1667, 0, %v1753
        %v1756 = vcosq.f32.pop %v1754
        %v1757 = vsinq.f32.pop %v1754
        %vm1758 = vweird.f32 %v206
        %v1759 = vand.u32 %v1755, 3
        %vm1760 = vcmp.lt.s32.totalorder %v1759, 2
        %vm1761 = vcmp.eq.s32.totalorder %v1759, 0
        %v1762 = vxor.u32 %v1757, 2147483648
        %v1763 = vsel %vm1761, %v1756, %v1762
        %vm1764 = vcmp.eq.s32.totalorder %v1759, 2
        %v1765 = vxor.u32 %v1756, 2147483648
        %v1766 = vsel %vm1764, %v1765, %v1757
        %v1767 = vsel %vm1760, %v1763, %v1766
        %v1768 = vsel %vm1758, nan, %v1767
        %v1769 = vand.u32 2147483647, %v207
        %vm1770 = vcmp.le.f32.partialorder %v1769, 0.7853982
        %vm1771 = vcmp.lt.s32.totalorder %v207, 0
        %v1772 = vand.u32 %v207, 2139095040
        %v1773 = vshrl.u32 %v1772, 23
        %v1774 = vsub.s32 %v1773, 127
        %v1775 = vand.u32 2147483647, %v207
        %v1776 = vand.u32 %v1775, 8388607
        %v1777 = vor.u32 %v1776, 8388608
        %v1778 = vsub.s32 0, %v1777
        %v1779 = vadd.s32 %v1774, 1
        %vm1780 = vcmp.gt.s32.totalorder %v1779, 0
        %v1781 = vsel %vm1780, %v1779, 0
        %v1782 = vshrl.u32 %v1781, 5
        %v1783 = vand.u32 %v1781, 31
        %v1784 = vsub.s32 32, %v1783
        %v1785 = vshrl.u32 683565275, %v1784
        %v1786 = vshll.u32 683565275, %v1783
        %v1787 = vshrl.u32 2475754826, %v1784
        %v1788 = vor.u32 %v1786, %v1787
        %v1789 = vshll.u32 2475754826, %v1783
        %v1790 = vshrl.u32 2131351028, %v1784
        %v1791 = vor.u32 %v1789, %v1790
        %v1792 = vshll.u32 2131351028, %v1783
        %v1793 = vshrl.u32 2102212464, %v1784
        %v1794 = vor.u32 %v1792, %v1793
        %v1795 = vshll.u32 2102212464, %v1783
        %v1796 = vshrl.u32 920167782, %v1784
        %v1797 = vor.u32 %v1795, %v1796
        %v1798 = vshll.u32 920167782, %v1783
        %v1799 = vshrl.u32 1326507024, %v1784
        %v1800 = vor.u32 %v1798, %v1799
        %vm1801 = vcmp.lt.s32.totalorder %v1782, 1
        %vm1802 = vcmp.lt.s32.totalorder %v1782, 2
        %vm1803 = vcmp.lt.s32.totalorder %v1782, 3
        %vm1804 = vcmp.lt.s32.totalorder %v1782, 4
        %v1805 = vsel %vm1801, %v1785, %v1788
        %v1806 = vsel %vm1804, %v1794, 2102212464
        %v1807 = vsel %vm1803, %v1791, %v1806
        %v1808 = vsel %vm1802, %v1805, %v1807
        %v1809 = vsel %vm1801, %v1788, %v1791
        %v1810 = vsel %vm1804, %v1797, 920167782
        %v1811 = vsel %vm1803, %v1794, %v1810
        %v1812 = vsel %vm1802, %v1809, %v1811
        %v1813 = vsel %vm1801, %v1791, %v1794
        %v1814 = vsel %vm1804, %v1800, 1326507024
        %v1815 = vsel %vm1803, %v1797, %v1814
        %v1816 = vsel %vm1802, %v1813, %v1815
        %v1817 = vshll.u32 %v1777, 8
        %v1818 = vmul.u32.u64.compose %v1817, %v1816
        %v1819 = vextract.low.u32 %v1818
        %v1820 = vextract.high.u32 %v1818
        %v1821 = vmul.u32.u64.compose %v1817, %v1812
        %v1822 = vextract.low.u32 %v1821
        %v1823 = vextract.high.u32 %v1821
        %v1824 = vmul.u32 %v1817, %v1808
        %v1825 = vadd.s32 %v1820, %v1822
        %vm1826 = vc.u32 %v1820, %v1822
        %v1827 = vadd.s32 %v1823, 1
        %v1828 = vsel %vm1826, %v1827, %v1823
        %v1829 = vadd.s32 %v1824, %v1828
        %v1830 = vadd.s32 %v1829, 536870912
        %v1831 = vshrl.u32 %v1830, 30
        %v1832 = vshll.u32 %v1831, 30
        %v1833 = vsub.s32 %v1829, %v1832
        %vm1834 = vcmp.lt.s32.totalorder %v1833, 0
        %v1835 = vsub.s32 0, %v1833
        %v1836 = vsel %vm1834, %v1835, %v1833
        %v1837 = vclz %v1836
        %v1838 = vsub.s32 %v1837, 2
        %vm1839 = vcmp.gt.s32.totalorder 0, %v1838
        %v1840 = vsel %vm1839, 0, %v1838
        %v1841 = vsub.s32 32, %v1840
        %v1842 = vshll.u32 %v1833, %v1840
        %v1843 = vshrl.u32 %v1825, %v1841
        %v1844 = vor.u32 %v1842, %v1843
        %v1845 = vsub.s32 4294967266, %v1840
        %v1846 = vadd.s32 %v1845, 127
        %v1847 = vshll.u32 %v1846, 23
        %v1848 = vor.u32 4788187, %v1847
        %v1849 = vand.u32 2147483647, %v1848
        %v1851 = vcvt.s32.f32 %v1844
        %v1852 = vmul.f32 %v1851, %v1849
        %v1853 = vxor.u32 %v1852, 2147483648
        %v1854 = vsel %vm1771, %v1853, %v1852
        %v1855 = vsub.s32 4, %v1831
        %v1856 = vsel %vm1771, %v1855, %v1831
        %v1857 = vsel %vm1770, %v207, %v1854
        %v1858 = vsel %vm1770, 0, %v1856
        %v1859 = vcosq.f32.pop %v1857
        %v1860 = vsinq.f32.pop %v1857
        %vm1861 = vweird.f32 %v207
        %v1862 = vand.u32 %v1858, 3
        %vm1863 = vcmp.lt.s32.totalorder %v1862, 2
        %vm1864 = vcmp.eq.s32.totalorder %v1862, 0
        %v1865 = vxor.u32 %v1860, 2147483648
        %v1866 = vsel %vm1864, %v1859, %v1865
        %vm1867 = vcmp.eq.s32.totalorder %v1862, 2
        %v1868 = vxor.u32 %v1859, 2147483648
        %v1869 = vsel %vm1867, %v1868, %v1860
        %v1870 = vsel %vm1863, %v1866, %v1869
        %v1871 = vsel %vm1861, nan, %v1870
        %1872 = vst [vmem:[%s137 + $0x8] sm:$0xff] %v1150
        %1873 = vst [vmem:[%s137 + $0x18] sm:$0xff] %v1253
        %1874 = vst [vmem:[%s137 + $0x28] sm:$0xff] %v1356
        %1875 = vst [vmem:[%s137 + $0x38] sm:$0xff] %v1459
        %1876 = vst [vmem:[%s137 + $0x48] sm:$0xff] %v1562
        %1877 = vst [vmem:[%s137 + $0x58] sm:$0xff] %v1665
        %1878 = vst [vmem:[%s137 + $0x68] sm:$0xff] %v1768
        %1879 = vst [vmem:[%s137 + $0x78] sm:$0xff] %v1871
        %s1880 = sand.u32 %s71, 1
        %s1881 = scalar_lea.sflag [#allocation3], %s1880
        %s1882 = sand.u32 %s71, 1
        %s1883 = smul.addr %s1882, 128
        %s1884 = scalar_lea.vmem [#allocation2], %s1883
        // Predicated region
        $region29: #{tpu_custom_call.1} parent=27 // pred_check
          %p1885 = pneg %p81
        $region30: #{tpu_custom_call.1} parent=27 // pred_check_branch
          %1887 = sbr.rel (%p1885) target = $region32
        $region31: #{tpu_custom_call.1} parent=27 // pred_region
          %s1888 = smul.u32 8, %s16
          %s1890 = ssub.s32 2048, 2048
          %1891 = vsyncadd %s1881, %s1890
          %s1892 = smul.addr %s1888, 2
          %s1893 = smul.addr %s1892, 128
          %s1894 = scalar_lea.hbm %s2, %s1893
          %s1895 = sshll.u32 %s1884, 4
          %s1896 = int_to_ptr.vmem [resolvable:$true] %s1895
          %1901 = dma.vmem_to_hbm [thread:$0]  %s1896, 2048, %s1894, %s1881, 256, 256, 16
        $region32: #{tpu_custom_call.1} parent=27 // pred_fallthru
          _
      $region28: #{tpu_custom_call.1} parent=5 // pred_fallthru
        _
      %p1902 = scmp.le.s32.totalorder 2, %s11
      // Predicated region
      $region33: #{tpu_custom_call.1} parent=5 // pred_check
        %p1903 = pneg %p1902
      $region34: #{tpu_custom_call.1} parent=5 // pred_check_branch
        %1905 = sbr.rel (%p1903) target = $region36
      $region35: #{tpu_custom_call.1} parent=5 // pred_region
        %s1906 = ssub.s32 %s11, 2
        // Predicated region
        $region37: #{tpu_custom_call.1} parent=35 // pred_check
          %p1907 = pneg %p87
        $region38: #{tpu_custom_call.1} parent=35 // pred_check_branch
          %1909 = sbr.rel (%p1907) target = $region40
        $region39: #{tpu_custom_call.1} parent=35 // pred_region
          %s1910 = sand.u32 %s72, 1
          %s1911 = scalar_lea.sflag [#allocation3], %s1910
          %s1912 = sand.u32 %s72, 1
          %s1913 = smul.addr %s1912, 128
          %s1914 = scalar_lea.vmem [#allocation2], %s1913
          %1915 = dma.done %s1911, 2048
        $region40: #{tpu_custom_call.1} parent=35 // pred_fallthru
          _
      $region36: #{tpu_custom_call.1} parent=5 // pred_fallthru
        _
    $region6: #{tpu_custom_call.1} parent=1 // loop_footer
      %s15 = sadd.s32 1, %s11
    $region7: #{tpu_custom_call.1} parent=1 // loop_footer_branch
      %10 = sbr.rel target = $region3
    $region8: #{tpu_custom_call.1} parent=1 // loop_exit
      _
    %1916 = vsyncpa [#allocation3], 1
    %s1917 = scalar_lea.sflag [#allocation3], 1
    %1918 = vsyncpa %s1917, 1

</llo_original>
